<compile_context>
chip_gen: v6e
topology: v6e:2x2x1
jax: 0.10.0
libtpu: 0.0.40
codegen_flags: <defaults>
</compile_context>

<pallas_src>
import functools

import jax
import jax.numpy as jnp
from jax import lax
from jax.experimental import pallas as pl
from jax.experimental.pallas import tpu as pltpu

DECAY = 0.25       # mem_update_MSF default decay
INIT_THRE = 0.5    # mem_update_MSF default init_thre
D_SYNAPSES = 4     # mem_update_MSF default D


def _snn_ae_kernel(x_ref, w1t_ref, b1_ref, w2t_ref, b2_ref, out_ref, enc_ref,
                   *, T, B):
    """Single-invocation kernel (no grid).

    x_ref   : (T*B, F)  all timesteps, flattened over (time, padded batch)
    w1t_ref : (F, H)    fc1 weight, pre-transposed
    b1_ref  : (1, H)    fc1 bias
    w2t_ref : (H, F)    fc2 weight, pre-transposed
    b2_ref  : (1, F)    fc2 bias
    out_ref : (T*B, F)  decoded output, flattened over (time, padded batch)
    enc_ref : (T*B, H)  VMEM scratch holding the spike trains (encoder output)
    """
    # fc1 for the whole time window in one MXU matmul (hoisted out of the loop).
    h = jnp.dot(x_ref[...], w1t_ref[...],
                preferred_element_type=jnp.float32,
                precision=lax.Precision.HIGHEST) + b1_ref[...]      # (T*B, H)

    # MSF recurrence over time, fully unrolled (T is small & static).
    # mem / spike live in vregs as straight-line SSA values; each spike chunk
    # is written directly into the tile-aligned scratch rows (B is a multiple
    # of 8, so these are pure full-sublane stores, no repacking).
    mem = None
    spike = None
    for t in range(T):
        h_t = h[t * B:(t + 1) * B, :]                                # (B, H) static, tile-aligned
        if t == 0:
            mem = h_t
        else:
            mask = (spike > 0.0).astype(jnp.float32)
            mem = mem * (DECAY * (1.0 - mask)) + h_t
        # Multi-synaptic firing: sum_d [mem >= init_thre + d], d = 0..D-1
        # == clip(floor(mem - init_thre) + 1, 0, D) for finite f32.
        spike = jnp.clip(jnp.floor(mem - INIT_THRE) + 1.0, 0.0, float(D_SYNAPSES))
        enc_ref[t * B:(t + 1) * B, :] = spike

    # fc2 for the whole time window in one MXU matmul, single bulk output store.
    dec = jnp.dot(enc_ref[...], w2t_ref[...],
                  preferred_element_type=jnp.float32,
                  precision=lax.Precision.HIGHEST) + b2_ref[...]     # (T*B, F)
    out_ref[...] = dec


@jax.jit
def snn_autoencoder_forward(x, w1, b1, w2, b2):
    """x: (T, B, F) float32.  w1: (H, F), b1: (H,), w2: (F, H), b2: (F,)."""
    T, B, F = x.shape
    H = w1.shape[0]
    Bp = ((B + 7) // 8) * 8          # pad batch to a sublane (8) multiple

    # Wrapper-side glue (free in XLA): pre-transpose weights so the kernel does
    # x @ W^T directly, 2-D biases, zero-pad batch, flatten (T, Bp) -> T*Bp rows.
    w1t = jnp.transpose(w1)          # (F, H)
    w2t = jnp.transpose(w2)          # (H, F)
    b1_2d = b1.reshape(1, H)
    b2_2d = b2.reshape(1, F)

    if Bp != B:
        x = jnp.pad(x, ((0, 0), (0, Bp - B), (0, 0)))
    x_flat = x.reshape(T * Bp, F)

    kernel = functools.partial(_snn_ae_kernel, T=T, B=Bp)

    # Advisory cost estimate (two matmuls + a few KB of traffic).
    flops = 4 * T * Bp * F * H                     # 2 dots, 2*M*K*N each
    bytes_accessed = 4 * (2 * T * Bp * F + 2 * F * H + H + F)

    vmem_spec = pl.BlockSpec(memory_space=pltpu.MemorySpace.VMEM)

    out_flat = pl.pallas_call(
        kernel,
        out_shape=jax.ShapeDtypeStruct((T * Bp, F), jnp.float32),
        in_specs=[vmem_spec] * 5,                  # full arrays resident in VMEM,
        out_specs=vmem_spec,                       # no grid -> no pipeline machinery
        scratch_shapes=[pltpu.VMEM((T * Bp, H), jnp.float32)],   # enc (spike) buffer
        cost_estimate=pl.CostEstimate(flops=flops, transcendentals=0,
                                      bytes_accessed=bytes_accessed),
    )(x_flat, w1t, b1_2d, w2t, b2_2d)

    out = out_flat.reshape(T, Bp, F)
    return out[:, :B, :]                            # drop padded batch rows


def snn_autoencoder_ref(x, w1, b1, w2, b2):
    """Pure-JAX reference mirroring the PyTorch forward (MSF, rectangular)."""
    T = x.shape[0]
    h = jnp.einsum('tbf,hf->tbh', x, w1,
                   precision=lax.Precision.HIGHEST) + b1          # fc1
    mem = jnp.zeros_like(h[0])
    spike = jnp.zeros_like(h[0])
    spikes = []
    for t in range(T):
        if t == 0:
            mem = h[t]
        else:
            mask = (spike > 0).astype(jnp.float32)
            mem = mem * DECAY * (1.0 - mask) + h[t]
        spike = sum((mem >= (INIT_THRE + float(d))).astype(jnp.float32)
                    for d in range(D_SYNAPSES))
        spikes.append(spike)
    enc = jnp.stack(spikes, axis=0)
    dec = jnp.einsum('tbh,fh->tbf', enc, w2,
                     precision=lax.Precision.HIGHEST) + b2        # fc2
    return dec


if __name__ == "__main__":
    T, B = 8, 4               # time window, batch
    INPUT_SIZE = 32           # input_size
    HIDDEN_SIZE = 16          # hidden_size (bottleneck)

    key = jax.random.PRNGKey(0)
    kx, k1, k2, k3, k4 = jax.random.split(key, 5)

    x = jax.random.normal(kx, (T, B, INPUT_SIZE), dtype=jnp.float32)

    # Deterministic parameter init (PyTorch Linear shapes: weight (out, in))
    w1 = jax.random.normal(k1, (HIDDEN_SIZE, INPUT_SIZE), jnp.float32) / jnp.sqrt(INPUT_SIZE)
    b1 = jax.random.normal(k2, (HIDDEN_SIZE,), jnp.float32) * 0.1
    w2 = jax.random.normal(k3, (INPUT_SIZE, HIDDEN_SIZE), jnp.float32) / jnp.sqrt(HIDDEN_SIZE)
    b2 = jax.random.normal(k4, (INPUT_SIZE,), jnp.float32) * 0.1

    out = snn_autoencoder_forward(x, w1, b1, w2, b2)
    out = jax.block_until_ready(out)

    ref = jax.block_until_ready(snn_autoencoder_ref(x, w1, b1, w2, b2))
    assert out.shape == (T, B, INPUT_SIZE)
    assert jnp.allclose(out, ref, atol=1e-3, rtol=1e-3), float(jnp.max(jnp.abs(out - ref)))

    print("KERNEL_OK")
</pallas_src>

<mosaic_0001>
module attributes {stable_mosaic.version = 11 : i64} {
  func.func @_snn_ae_kernel(%arg0: memref<64x32xf32, #tpu.memory_space<vmem>>, %arg1: memref<32x16xf32, #tpu.memory_space<vmem>>, %arg2: memref<1x16xf32, #tpu.memory_space<vmem>>, %arg3: memref<16x32xf32, #tpu.memory_space<vmem>>, %arg4: memref<1x32xf32, #tpu.memory_space<vmem>>, %arg5: memref<64x32xf32, #tpu.memory_space<vmem>>, %arg6: memref<64x16xf32, #tpu.memory_space<vmem>>) attributes {dimension_semantics = [], scalar_prefetch = 0 : i64, scratch_operands = 1 : i64, tpu.core_type = #tpu.core_type<tc>} {
    %c0 = arith.constant 0 : index
    %c0_0 = arith.constant 0 : index
    %0 = vector.load %arg0[%c0, %c0_0] : memref<64x32xf32, #tpu.memory_space<vmem>>, vector<64x32xf32>
    %c0_1 = arith.constant 0 : index
    %c0_2 = arith.constant 0 : index
    %1 = vector.load %arg1[%c0_1, %c0_2] : memref<32x16xf32, #tpu.memory_space<vmem>>, vector<32x16xf32>
    %cst = arith.constant dense<0.000000e+00> : vector<64x16xf32>
    %2 = tpu.matmul %0, %1, %cst {dimension_numbers = #tpu.dot_dimension_numbers<[1], [0], [0], [1], [0, 0, 1, 1], [], []>, precision = #tpu.contract_precision<fp32>} : vector<64x32xf32>, vector<32x16xf32>, vector<64x16xf32> -> vector<64x16xf32>
    %c0_3 = arith.constant 0 : index
    %c0_4 = arith.constant 0 : index
    %3 = vector.load %arg2[%c0_3, %c0_4] : memref<1x16xf32, #tpu.memory_space<vmem>>, vector<1x16xf32>
    %4 = vector.broadcast %3 : vector<1x16xf32> to vector<64x16xf32>
    %5 = arith.addf %2, %4 : vector<64x16xf32>
    %6 = vector.extract_strided_slice %5 {offsets = [0, 0], sizes = [8, 16], strides = [1, 1]} : vector<64x16xf32> to vector<8x16xf32>
    %cst_5 = arith.constant 5.000000e-01 : f32
    %7 = vector.broadcast %cst_5 : f32 to vector<8x16xf32>
    %8 = arith.subf %6, %7 : vector<8x16xf32>
    %9 = math.floor %8 : vector<8x16xf32>
    %cst_6 = arith.constant 1.000000e+00 : f32
    %10 = vector.broadcast %cst_6 : f32 to vector<8x16xf32>
    %11 = arith.addf %9, %10 : vector<8x16xf32>
    %cst_7 = arith.constant 0.000000e+00 : f32
    %cst_8 = arith.constant 4.000000e+00 : f32
    %12 = vector.broadcast %cst_7 : f32 to vector<8x16xf32>
    %13 = arith.maximumf %12, %11 : vector<8x16xf32>
    %14 = vector.broadcast %cst_8 : f32 to vector<8x16xf32>
    %15 = arith.minimumf %14, %13 : vector<8x16xf32>
    %c0_9 = arith.constant 0 : index
    %c0_10 = arith.constant 0 : index
    %16 = vector.load %arg6[%c0_9, %c0_10] : memref<64x16xf32, #tpu.memory_space<vmem>>, vector<8x16xf32>
    tpu.vector_store %arg6[%c0_9, %c0_10], %15 {strides = array<i32>} : memref<64x16xf32, #tpu.memory_space<vmem>>, vector<8x16xf32>,
    %17 = vector.extract_strided_slice %5 {offsets = [8, 0], sizes = [8, 16], strides = [1, 1]} : vector<64x16xf32> to vector<8x16xf32>
    %cst_11 = arith.constant 0.000000e+00 : f32
    %18 = vector.broadcast %cst_11 : f32 to vector<8x16xf32>
    %19 = arith.cmpf ogt, %15, %18 : vector<8x16xf32>
    %20 = arith.extui %19 : vector<8x16xi1> to vector<8x16xi32>
    %21 = arith.sitofp %20 : vector<8x16xi32> to vector<8x16xf32>
    %cst_12 = arith.constant 1.000000e+00 : f32
    %22 = vector.broadcast %cst_12 : f32 to vector<8x16xf32>
    %23 = arith.subf %22, %21 : vector<8x16xf32>
    %cst_13 = arith.constant 2.500000e-01 : f32
    %24 = vector.broadcast %cst_13 : f32 to vector<8x16xf32>
    %25 = arith.mulf %24, %23 : vector<8x16xf32>
    %26 = arith.mulf %6, %25 : vector<8x16xf32>
    %27 = arith.addf %26, %17 : vector<8x16xf32>
    %cst_14 = arith.constant 5.000000e-01 : f32
    %28 = vector.broadcast %cst_14 : f32 to vector<8x16xf32>
    %29 = arith.subf %27, %28 : vector<8x16xf32>
    %30 = math.floor %29 : vector<8x16xf32>
    %cst_15 = arith.constant 1.000000e+00 : f32
    %31 = vector.broadcast %cst_15 : f32 to vector<8x16xf32>
    %32 = arith.addf %30, %31 : vector<8x16xf32>
    %cst_16 = arith.constant 0.000000e+00 : f32
    %cst_17 = arith.constant 4.000000e+00 : f32
    %33 = vector.broadcast %cst_16 : f32 to vector<8x16xf32>
    %34 = arith.maximumf %33, %32 : vector<8x16xf32>
    %35 = vector.broadcast %cst_17 : f32 to vector<8x16xf32>
    %36 = arith.minimumf %35, %34 : vector<8x16xf32>
    %c8 = arith.constant 8 : index
    %c0_18 = arith.constant 0 : index
    %37 = vector.load %arg6[%c8, %c0_18] : memref<64x16xf32, #tpu.memory_space<vmem>>, vector<8x16xf32>
    tpu.vector_store %arg6[%c8, %c0_18], %36 {strides = array<i32>} : memref<64x16xf32, #tpu.memory_space<vmem>>, vector<8x16xf32>,
    %38 = vector.extract_strided_slice %5 {offsets = [16, 0], sizes = [8, 16], strides = [1, 1]} : vector<64x16xf32> to vector<8x16xf32>
    %cst_19 = arith.constant 0.000000e+00 : f32
    %39 = vector.broadcast %cst_19 : f32 to vector<8x16xf32>
    %40 = arith.cmpf ogt, %36, %39 : vector<8x16xf32>
    %41 = arith.extui %40 : vector<8x16xi1> to vector<8x16xi32>
    %42 = arith.sitofp %41 : vector<8x16xi32> to vector<8x16xf32>
    %cst_20 = arith.constant 1.000000e+00 : f32
    %43 = vector.broadcast %cst_20 : f32 to vector<8x16xf32>
    %44 = arith.subf %43, %42 : vector<8x16xf32>
    %cst_21 = arith.constant 2.500000e-01 : f32
    %45 = vector.broadcast %cst_21 : f32 to vector<8x16xf32>
    %46 = arith.mulf %45, %44 : vector<8x16xf32>
    %47 = arith.mulf %27, %46 : vector<8x16xf32>
    %48 = arith.addf %47, %38 : vector<8x16xf32>
    %cst_22 = arith.constant 5.000000e-01 : f32
    %49 = vector.broadcast %cst_22 : f32 to vector<8x16xf32>
    %50 = arith.subf %48, %49 : vector<8x16xf32>
    %51 = math.floor %50 : vector<8x16xf32>
    %cst_23 = arith.constant 1.000000e+00 : f32
    %52 = vector.broadcast %cst_23 : f32 to vector<8x16xf32>
    %53 = arith.addf %51, %52 : vector<8x16xf32>
    %cst_24 = arith.constant 0.000000e+00 : f32
    %cst_25 = arith.constant 4.000000e+00 : f32
    %54 = vector.broadcast %cst_24 : f32 to vector<8x16xf32>
    %55 = arith.maximumf %54, %53 : vector<8x16xf32>
    %56 = vector.broadcast %cst_25 : f32 to vector<8x16xf32>
    %57 = arith.minimumf %56, %55 : vector<8x16xf32>
    %c16 = arith.constant 16 : index
    %c0_26 = arith.constant 0 : index
    %58 = vector.load %arg6[%c16, %c0_26] : memref<64x16xf32, #tpu.memory_space<vmem>>, vector<8x16xf32>
    tpu.vector_store %arg6[%c16, %c0_26], %57 {strides = array<i32>} : memref<64x16xf32, #tpu.memory_space<vmem>>, vector<8x16xf32>,
    %59 = vector.extract_strided_slice %5 {offsets = [24, 0], sizes = [8, 16], strides = [1, 1]} : vector<64x16xf32> to vector<8x16xf32>
    %cst_27 = arith.constant 0.000000e+00 : f32
    %60 = vector.broadcast %cst_27 : f32 to vector<8x16xf32>
    %61 = arith.cmpf ogt, %57, %60 : vector<8x16xf32>
    %62 = arith.extui %61 : vector<8x16xi1> to vector<8x16xi32>
    %63 = arith.sitofp %62 : vector<8x16xi32> to vector<8x16xf32>
    %cst_28 = arith.constant 1.000000e+00 : f32
    %64 = vector.broadcast %cst_28 : f32 to vector<8x16xf32>
    %65 = arith.subf %64, %63 : vector<8x16xf32>
    %cst_29 = arith.constant 2.500000e-01 : f32
    %66 = vector.broadcast %cst_29 : f32 to vector<8x16xf32>
    %67 = arith.mulf %66, %65 : vector<8x16xf32>
    %68 = arith.mulf %48, %67 : vector<8x16xf32>
    %69 = arith.addf %68, %59 : vector<8x16xf32>
    %cst_30 = arith.constant 5.000000e-01 : f32
    %70 = vector.broadcast %cst_30 : f32 to vector<8x16xf32>
    %71 = arith.subf %69, %70 : vector<8x16xf32>
    %72 = math.floor %71 : vector<8x16xf32>
    %cst_31 = arith.constant 1.000000e+00 : f32
    %73 = vector.broadcast %cst_31 : f32 to vector<8x16xf32>
    %74 = arith.addf %72, %73 : vector<8x16xf32>
    %cst_32 = arith.constant 0.000000e+00 : f32
    %cst_33 = arith.constant 4.000000e+00 : f32
    %75 = vector.broadcast %cst_32 : f32 to vector<8x16xf32>
    %76 = arith.maximumf %75, %74 : vector<8x16xf32>
    %77 = vector.broadcast %cst_33 : f32 to vector<8x16xf32>
    %78 = arith.minimumf %77, %76 : vector<8x16xf32>
    %c24 = arith.constant 24 : index
    %c0_34 = arith.constant 0 : index
    %79 = vector.load %arg6[%c24, %c0_34] : memref<64x16xf32, #tpu.memory_space<vmem>>, vector<8x16xf32>
    tpu.vector_store %arg6[%c24, %c0_34], %78 {strides = array<i32>} : memref<64x16xf32, #tpu.memory_space<vmem>>, vector<8x16xf32>,
    %80 = vector.extract_strided_slice %5 {offsets = [32, 0], sizes = [8, 16], strides = [1, 1]} : vector<64x16xf32> to vector<8x16xf32>
    %cst_35 = arith.constant 0.000000e+00 : f32
    %81 = vector.broadcast %cst_35 : f32 to vector<8x16xf32>
    %82 = arith.cmpf ogt, %78, %81 : vector<8x16xf32>
    %83 = arith.extui %82 : vector<8x16xi1> to vector<8x16xi32>
    %84 = arith.sitofp %83 : vector<8x16xi32> to vector<8x16xf32>
    %cst_36 = arith.constant 1.000000e+00 : f32
    %85 = vector.broadcast %cst_36 : f32 to vector<8x16xf32>
    %86 = arith.subf %85, %84 : vector<8x16xf32>
    %cst_37 = arith.constant 2.500000e-01 : f32
    %87 = vector.broadcast %cst_37 : f32 to vector<8x16xf32>
    %88 = arith.mulf %87, %86 : vector<8x16xf32>
    %89 = arith.mulf %69, %88 : vector<8x16xf32>
    %90 = arith.addf %89, %80 : vector<8x16xf32>
    %cst_38 = arith.constant 5.000000e-01 : f32
    %91 = vector.broadcast %cst_38 : f32 to vector<8x16xf32>
    %92 = arith.subf %90, %91 : vector<8x16xf32>
    %93 = math.floor %92 : vector<8x16xf32>
    %cst_39 = arith.constant 1.000000e+00 : f32
    %94 = vector.broadcast %cst_39 : f32 to vector<8x16xf32>
    %95 = arith.addf %93, %94 : vector<8x16xf32>
    %cst_40 = arith.constant 0.000000e+00 : f32
    %cst_41 = arith.constant 4.000000e+00 : f32
    %96 = vector.broadcast %cst_40 : f32 to vector<8x16xf32>
    %97 = arith.maximumf %96, %95 : vector<8x16xf32>
    %98 = vector.broadcast %cst_41 : f32 to vector<8x16xf32>
    %99 = arith.minimumf %98, %97 : vector<8x16xf32>
    %c32 = arith.constant 32 : index
    %c0_42 = arith.constant 0 : index
    %100 = vector.load %arg6[%c32, %c0_42] : memref<64x16xf32, #tpu.memory_space<vmem>>, vector<8x16xf32>
    tpu.vector_store %arg6[%c32, %c0_42], %99 {strides = array<i32>} : memref<64x16xf32, #tpu.memory_space<vmem>>, vector<8x16xf32>,
    %101 = vector.extract_strided_slice %5 {offsets = [40, 0], sizes = [8, 16], strides = [1, 1]} : vector<64x16xf32> to vector<8x16xf32>
    %cst_43 = arith.constant 0.000000e+00 : f32
    %102 = vector.broadcast %cst_43 : f32 to vector<8x16xf32>
    %103 = arith.cmpf ogt, %99, %102 : vector<8x16xf32>
    %104 = arith.extui %103 : vector<8x16xi1> to vector<8x16xi32>
    %105 = arith.sitofp %104 : vector<8x16xi32> to vector<8x16xf32>
    %cst_44 = arith.constant 1.000000e+00 : f32
    %106 = vector.broadcast %cst_44 : f32 to vector<8x16xf32>
    %107 = arith.subf %106, %105 : vector<8x16xf32>
    %cst_45 = arith.constant 2.500000e-01 : f32
    %108 = vector.broadcast %cst_45 : f32 to vector<8x16xf32>
    %109 = arith.mulf %108, %107 : vector<8x16xf32>
    %110 = arith.mulf %90, %109 : vector<8x16xf32>
    %111 = arith.addf %110, %101 : vector<8x16xf32>
    %cst_46 = arith.constant 5.000000e-01 : f32
    %112 = vector.broadcast %cst_46 : f32 to vector<8x16xf32>
    %113 = arith.subf %111, %112 : vector<8x16xf32>
    %114 = math.floor %113 : vector<8x16xf32>
    %cst_47 = arith.constant 1.000000e+00 : f32
    %115 = vector.broadcast %cst_47 : f32 to vector<8x16xf32>
    %116 = arith.addf %114, %115 : vector<8x16xf32>
    %cst_48 = arith.constant 0.000000e+00 : f32
    %cst_49 = arith.constant 4.000000e+00 : f32
    %117 = vector.broadcast %cst_48 : f32 to vector<8x16xf32>
    %118 = arith.maximumf %117, %116 : vector<8x16xf32>
    %119 = vector.broadcast %cst_49 : f32 to vector<8x16xf32>
    %120 = arith.minimumf %119, %118 : vector<8x16xf32>
    %c40 = arith.constant 40 : index
    %c0_50 = arith.constant 0 : index
    %121 = vector.load %arg6[%c40, %c0_50] : memref<64x16xf32, #tpu.memory_space<vmem>>, vector<8x16xf32>
    tpu.vector_store %arg6[%c40, %c0_50], %120 {strides = array<i32>} : memref<64x16xf32, #tpu.memory_space<vmem>>, vector<8x16xf32>,
    %122 = vector.extract_strided_slice %5 {offsets = [48, 0], sizes = [8, 16], strides = [1, 1]} : vector<64x16xf32> to vector<8x16xf32>
    %cst_51 = arith.constant 0.000000e+00 : f32
    %123 = vector.broadcast %cst_51 : f32 to vector<8x16xf32>
    %124 = arith.cmpf ogt, %120, %123 : vector<8x16xf32>
    %125 = arith.extui %124 : vector<8x16xi1> to vector<8x16xi32>
    %126 = arith.sitofp %125 : vector<8x16xi32> to vector<8x16xf32>
    %cst_52 = arith.constant 1.000000e+00 : f32
    %127 = vector.broadcast %cst_52 : f32 to vector<8x16xf32>
    %128 = arith.subf %127, %126 : vector<8x16xf32>
    %cst_53 = arith.constant 2.500000e-01 : f32
    %129 = vector.broadcast %cst_53 : f32 to vector<8x16xf32>
    %130 = arith.mulf %129, %128 : vector<8x16xf32>
    %131 = arith.mulf %111, %130 : vector<8x16xf32>
    %132 = arith.addf %131, %122 : vector<8x16xf32>
    %cst_54 = arith.constant 5.000000e-01 : f32
    %133 = vector.broadcast %cst_54 : f32 to vector<8x16xf32>
    %134 = arith.subf %132, %133 : vector<8x16xf32>
    %135 = math.floor %134 : vector<8x16xf32>
    %cst_55 = arith.constant 1.000000e+00 : f32
    %136 = vector.broadcast %cst_55 : f32 to vector<8x16xf32>
    %137 = arith.addf %135, %136 : vector<8x16xf32>
    %cst_56 = arith.constant 0.000000e+00 : f32
    %cst_57 = arith.constant 4.000000e+00 : f32
    %138 = vector.broadcast %cst_56 : f32 to vector<8x16xf32>
    %139 = arith.maximumf %138, %137 : vector<8x16xf32>
    %140 = vector.broadcast %cst_57 : f32 to vector<8x16xf32>
    %141 = arith.minimumf %140, %139 : vector<8x16xf32>
    %c48 = arith.constant 48 : index
    %c0_58 = arith.constant 0 : index
    %142 = vector.load %arg6[%c48, %c0_58] : memref<64x16xf32, #tpu.memory_space<vmem>>, vector<8x16xf32>
    tpu.vector_store %arg6[%c48, %c0_58], %141 {strides = array<i32>} : memref<64x16xf32, #tpu.memory_space<vmem>>, vector<8x16xf32>,
    %143 = vector.extract_strided_slice %5 {offsets = [56, 0], sizes = [8, 16], strides = [1, 1]} : vector<64x16xf32> to vector<8x16xf32>
    %cst_59 = arith.constant 0.000000e+00 : f32
    %144 = vector.broadcast %cst_59 : f32 to vector<8x16xf32>
    %145 = arith.cmpf ogt, %141, %144 : vector<8x16xf32>
    %146 = arith.extui %145 : vector<8x16xi1> to vector<8x16xi32>
    %147 = arith.sitofp %146 : vector<8x16xi32> to vector<8x16xf32>
    %cst_60 = arith.constant 1.000000e+00 : f32
    %148 = vector.broadcast %cst_60 : f32 to vector<8x16xf32>
    %149 = arith.subf %148, %147 : vector<8x16xf32>
    %cst_61 = arith.constant 2.500000e-01 : f32
    %150 = vector.broadcast %cst_61 : f32 to vector<8x16xf32>
    %151 = arith.mulf %150, %149 : vector<8x16xf32>
    %152 = arith.mulf %132, %151 : vector<8x16xf32>
    %153 = arith.addf %152, %143 : vector<8x16xf32>
    %cst_62 = arith.constant 5.000000e-01 : f32
    %154 = vector.broadcast %cst_62 : f32 to vector<8x16xf32>
    %155 = arith.subf %153, %154 : vector<8x16xf32>
    %156 = math.floor %155 : vector<8x16xf32>
    %cst_63 = arith.constant 1.000000e+00 : f32
    %157 = vector.broadcast %cst_63 : f32 to vector<8x16xf32>
    %158 = arith.addf %156, %157 : vector<8x16xf32>
    %cst_64 = arith.constant 0.000000e+00 : f32
    %cst_65 = arith.constant 4.000000e+00 : f32
    %159 = vector.broadcast %cst_64 : f32 to vector<8x16xf32>
    %160 = arith.maximumf %159, %158 : vector<8x16xf32>
    %161 = vector.broadcast %cst_65 : f32 to vector<8x16xf32>
    %162 = arith.minimumf %161, %160 : vector<8x16xf32>
    %c56 = arith.constant 56 : index
    %c0_66 = arith.constant 0 : index
    %163 = vector.load %arg6[%c56, %c0_66] : memref<64x16xf32, #tpu.memory_space<vmem>>, vector<8x16xf32>
    tpu.vector_store %arg6[%c56, %c0_66], %162 {strides = array<i32>} : memref<64x16xf32, #tpu.memory_space<vmem>>, vector<8x16xf32>,
    %c0_67 = arith.constant 0 : index
    %c0_68 = arith.constant 0 : index
    %164 = vector.load %arg6[%c0_67, %c0_68] : memref<64x16xf32, #tpu.memory_space<vmem>>, vector<64x16xf32>
    %c0_69 = arith.constant 0 : index
    %c0_70 = arith.constant 0 : index
    %165 = vector.load %arg3[%c0_69, %c0_70] : memref<16x32xf32, #tpu.memory_space<vmem>>, vector<16x32xf32>
    %cst_71 = arith.constant dense<0.000000e+00> : vector<64x32xf32>
    %166 = tpu.matmul %164, %165, %cst_71 {dimension_numbers = #tpu.dot_dimension_numbers<[1], [0], [0], [1], [0, 0, 1, 1], [], []>, precision = #tpu.contract_precision<fp32>} : vector<64x16xf32>, vector<16x32xf32>, vector<64x32xf32> -> vector<64x32xf32>
    %c0_72 = arith.constant 0 : index
    %c0_73 = arith.constant 0 : index
    %167 = vector.load %arg4[%c0_72, %c0_73] : memref<1x32xf32, #tpu.memory_space<vmem>>, vector<1x32xf32>
    %168 = vector.broadcast %167 : vector<1x32xf32> to vector<64x32xf32>
    %169 = arith.addf %166, %168 : vector<64x32xf32>
    %c0_74 = arith.constant 0 : index
    %c0_75 = arith.constant 0 : index
    %170 = vector.load %arg5[%c0_74, %c0_75] : memref<64x32xf32, #tpu.memory_space<vmem>>, vector<64x32xf32>
    tpu.vector_store %arg5[%c0_74, %c0_75], %169 {strides = array<i32>} : memref<64x32xf32, #tpu.memory_space<vmem>>, vector<64x32xf32>,
    return
  }
}

</mosaic_0001>

<llo_original>
// kernel: snn_autoencoder_forward.1
$region0: #{snn_autoencoder_forward.1}
  #allocation0 [shape = 'u32[]', space=smem, size = 0x4, offset = 0x4, fixed_abs, tag = 'smem constant byte address 0x4 - core index']
  #allocation1 [shape = 'u32[144,128]{1,0:T(1,128)}', space=vmem, size = 0x12000, scoped, tag = 'internal scratch']
  #allocation2 [shape = 'f32[64,16]{1,0:T(8,128)}', space=vmem, size = 0x8000, scoped, tag = 'scratch operand']
  %s0 = inlined_call_operand.vmem [shape: f32[64,32], index: 0, kind: input, shape index: {}]
  %s1 = inlined_call_operand.vmem [shape: f32[32,16], index: 1, kind: input, shape index: {}]
  %s2 = inlined_call_operand.vmem [shape: f32[1,16], index: 2, kind: input, shape index: {}]
  %s3 = inlined_call_operand.vmem [shape: f32[16,32], index: 3, kind: input, shape index: {}]
  %s4 = inlined_call_operand.vmem [shape: f32[1,32], index: 4, kind: input, shape index: {}]
  %s5 = inlined_call_operand.vmem [shape: f32[64,32], index: 5, kind: output, shape index: {}]
  %s6 = sld [smem:[#allocation0]]
  $region30: #{snn_autoencoder_forward.1} parent=0
    _
  %s8 = ssub.s32 1, %s6
  %s9 = scalar_select 0, %s8, %s6
  // Predicated region
  $region2: #{snn_autoencoder_forward.1} parent=0 // pred_check
    _
  $region3: #{snn_autoencoder_forward.1} parent=0 // pred_check_branch
    %11 = sbr.rel (0) target = $region5
  $region4: #{snn_autoencoder_forward.1} parent=0 // pred_region
    _
  $region5: #{snn_autoencoder_forward.1} parent=0 // pred_fallthru
    _
  // Predicated region
  $region6: #{snn_autoencoder_forward.1} parent=0 // pred_check
    _
  $region7: #{snn_autoencoder_forward.1} parent=0 // pred_check_branch
    %13 = sbr.rel (0) target = $region9
  $region8: #{snn_autoencoder_forward.1} parent=0 // pred_region
    _
  $region9: #{snn_autoencoder_forward.1} parent=0 // pred_fallthru
    _
  // Predicated region
  $region10: #{snn_autoencoder_forward.1} parent=0 // pred_check
    _
  $region11: #{snn_autoencoder_forward.1} parent=0 // pred_check_branch
    %15 = sbr.rel (0) target = $region13
  $region12: #{snn_autoencoder_forward.1} parent=0 // pred_region
    _
  $region13: #{snn_autoencoder_forward.1} parent=0 // pred_fallthru
    _
  // Predicated region
  $region14: #{snn_autoencoder_forward.1} parent=0 // pred_check
    _
  $region15: #{snn_autoencoder_forward.1} parent=0 // pred_check_branch
    %17 = sbr.rel (0) target = $region17
  $region16: #{snn_autoencoder_forward.1} parent=0 // pred_region
    _
  $region17: #{snn_autoencoder_forward.1} parent=0 // pred_fallthru
    _
  // Predicated region
  $region18: #{snn_autoencoder_forward.1} parent=0 // pred_check
    _
  $region19: #{snn_autoencoder_forward.1} parent=0 // pred_check_branch
    %19 = sbr.rel (0) target = $region21
  $region20: #{snn_autoencoder_forward.1} parent=0 // pred_region
    _
  $region21: #{snn_autoencoder_forward.1} parent=0 // pred_fallthru
    _
  %v20 = vld [vmem:[%s0] sm:$0xff]
  %v21 = vld [vmem:[%s0 + $0x8] sm:$0xff]
  %v22 = vld [vmem:[%s0 + $0x10] sm:$0xff]
  %v23 = vld [vmem:[%s0 + $0x18] sm:$0xff]
  %v24 = vld [vmem:[%s0 + $0x20] sm:$0xff]
  %v25 = vld [vmem:[%s0 + $0x28] sm:$0xff]
  %v26 = vld [vmem:[%s0 + $0x30] sm:$0xff]
  %v27 = vld [vmem:[%s0 + $0x38] sm:$0xff]
  %v28 = vld [vmem:[%s1] sm:$0xff]
  %v29 = vld [vmem:[%s1 + $0x8] sm:$0xff]
  %v30 = vld [vmem:[%s1 + $0x10] sm:$0xff]
  %v31 = vld [vmem:[%s1 + $0x18] sm:$0xff]
  %v32 = vld [vmem:[%s2] sm:$0x1]
  %v34 = vlaneseq
  %v35 = vshrl.u32 %v34, 7
  %v36 = vsub.s32 0, %v35
  %v37 = vrot.slane %v32, %v36
  %vm39 = vcmask 261120
  %v41 = vsel %vm39, %v20, 0
  %v44 = vsel %vm39, %v21, 0
  %v47 = vsel %vm39, %v22, 0
  %v50 = vsel %vm39, %v23, 0
  %v53 = vsel %vm39, %v24, 0
  %v56 = vsel %vm39, %v25, 0
  %v59 = vsel %vm39, %v26, 0
  %v62 = vsel %vm39, %v27, 0
  %64 = vmatprep.subr.mxu0 0.0
  %65 = vmatpush1.msra.mxu0 0.0
  %66 = vmatprep.subr.mxu0 0.0
  %67 = vmatpush1.msra.mxu0 0.0
  %68 = vmatprep.subr.mxu0 0.0
  %69 = vmatpush1.msra.mxu0 0.0
  %70 = vmatprep.subr.mxu0 0.0
  %71 = vmatpush1.msra.mxu0 0.0
  %72 = vmatprep.subr.mxu0 0.0
  %73 = vmatpush1.msra.mxu0 0.0
  %74 = vmatprep.subr.mxu0 0.0
  %75 = vmatpush1.msra.mxu0 0.0
  %76 = vmatprep.subr.mxu0 0.0
  %77 = vmatpush1.msra.mxu0 0.0
  %78 = vmatprep.subr.mxu0 0.0
  %79 = vmatpush1.msra.mxu0 0.0
  %80 = vmatprep.subr.mxu0 0.0
  %81 = vmatpush1.msra.mxu0 0.0
  %82 = vmatprep.subr.mxu0 0.0
  %83 = vmatpush1.msra.mxu0 0.0
  %84 = vmatprep.subr.mxu0 0.0
  %85 = vmatpush1.msra.mxu0 0.0
  %86 = vmatprep.subr.mxu0 0.0
  %87 = vmatpush1.msra.mxu0 0.0
  %88 = vmatprep.subr.mxu0 0.0
  %v89 = vand.u32 %v31, 4294901760
  %90 = vmatpush1.msra.mxu0 %v89
  %91 = vmatprep.subr.mxu0 0.0
  %v92 = vand.u32 %v30, 4294901760
  %93 = vmatpush1.msra.mxu0 %v92
  %94 = vmatprep.subr.mxu0 0.0
  %v95 = vand.u32 %v29, 4294901760
  %96 = vmatpush1.msra.mxu0 %v95
  %97 = vmatprep.subr.mxu0 0.0
  %v98 = vand.u32 %v28, 4294901760
  %99 = vmatpush1.msra.mxu0 %v98
  %100 = vmatprep.subr.mxu0 0.0
  %101 = vmatpush2.msra.mxu0 0.0
  %102 = vmatprep.subr.mxu0 0.0
  %103 = vmatpush2.msra.mxu0 0.0
  %104 = vmatprep.subr.mxu0 0.0
  %105 = vmatpush2.msra.mxu0 0.0
  %106 = vmatprep.subr.mxu0 0.0
  %107 = vmatpush2.msra.mxu0 0.0
  %108 = vmatprep.subr.mxu0 0.0
  %109 = vmatpush2.msra.mxu0 0.0
  %110 = vmatprep.subr.mxu0 0.0
  %111 = vmatpush2.msra.mxu0 0.0
  %112 = vmatprep.subr.mxu0 0.0
  %113 = vmatpush2.msra.mxu0 0.0
  %114 = vmatprep.subr.mxu0 0.0
  %115 = vmatpush2.msra.mxu0 0.0
  %116 = vmatprep.subr.mxu0 0.0
  %117 = vmatpush2.msra.mxu0 0.0
  %118 = vmatprep.subr.mxu0 0.0
  %119 = vmatpush2.msra.mxu0 0.0
  %120 = vmatprep.subr.mxu0 0.0
  %121 = vmatpush2.msra.mxu0 0.0
  %122 = vmatprep.subr.mxu0 0.0
  %123 = vmatpush2.msra.mxu0 0.0
  %124 = vmatprep.subr.mxu0 0.0
  %125 = vmatpush2.msra.mxu0 0.0
  %126 = vmatprep.subr.mxu0 0.0
  %127 = vmatpush2.msra.mxu0 0.0
  %128 = vmatprep.subr.mxu0 0.0
  %129 = vmatpush2.msra.mxu0 0.0
  %130 = vmatprep.subr.mxu0 0.0
  %131 = vmatpush2.msra.mxu0 0.0
  %132 = vmatprep.mubr.f32.mxu0 0.0
  %v133 = vand.u32 %v41, 4294901760
  %v134 = vsub.f32 %v41, %v133
  %v135 = vand.u32 %v134, 4294901760
  %v136 = vsub.f32 %v134, %v135
  %v137 = vand.u32 %v136, 4294901760
  %138 = vmatmul.mubr.f32.gmra.mxu0 %v137
  %v139 = vpop.f32.mrf.mxu0
  %v140 = vadd.f32 %v37, %v139
  %v141 = vpop.f32.mrf.mxu0
  %142 = vmatprep.mubr.f32.mxu0 0.0
  %v143 = vand.u32 %v44, 4294901760
  %v144 = vsub.f32 %v44, %v143
  %v145 = vand.u32 %v144, 4294901760
  %v146 = vsub.f32 %v144, %v145
  %v147 = vand.u32 %v146, 4294901760
  %148 = vmatmul.mubr.f32.gmra.mxu0 %v147
  %v149 = vpop.f32.mrf.mxu0
  %v150 = vadd.f32 %v37, %v149
  %v151 = vpop.f32.mrf.mxu0
  %152 = vmatprep.mubr.f32.mxu0 0.0
  %v153 = vand.u32 %v47, 4294901760
  %v154 = vsub.f32 %v47, %v153
  %v155 = vand.u32 %v154, 4294901760
  %v156 = vsub.f32 %v154, %v155
  %v157 = vand.u32 %v156, 4294901760
  %158 = vmatmul.mubr.f32.gmra.mxu0 %v157
  %v159 = vpop.f32.mrf.mxu0
  %v160 = vadd.f32 %v37, %v159
  %v161 = vpop.f32.mrf.mxu0
  %162 = vmatprep.mubr.f32.mxu0 0.0
  %v163 = vand.u32 %v50, 4294901760
  %v164 = vsub.f32 %v50, %v163
  %v165 = vand.u32 %v164, 4294901760
  %v166 = vsub.f32 %v164, %v165
  %v167 = vand.u32 %v166, 4294901760
  %168 = vmatmul.mubr.f32.gmra.mxu0 %v167
  %v169 = vpop.f32.mrf.mxu0
  %v170 = vadd.f32 %v37, %v169
  %v171 = vpop.f32.mrf.mxu0
  %172 = vmatprep.mubr.f32.mxu0 0.0
  %v173 = vand.u32 %v53, 4294901760
  %v174 = vsub.f32 %v53, %v173
  %v175 = vand.u32 %v174, 4294901760
  %v176 = vsub.f32 %v174, %v175
  %v177 = vand.u32 %v176, 4294901760
  %178 = vmatmul.mubr.f32.gmra.mxu0 %v177
  %v179 = vpop.f32.mrf.mxu0
  %v180 = vadd.f32 %v37, %v179
  %v181 = vpop.f32.mrf.mxu0
  %182 = vmatprep.mubr.f32.mxu0 0.0
  %v183 = vand.u32 %v56, 4294901760
  %v184 = vsub.f32 %v56, %v183
  %v185 = vand.u32 %v184, 4294901760
  %v186 = vsub.f32 %v184, %v185
  %v187 = vand.u32 %v186, 4294901760
  %188 = vmatmul.mubr.f32.gmra.mxu0 %v187
  %v189 = vpop.f32.mrf.mxu0
  %v190 = vadd.f32 %v37, %v189
  %v191 = vpop.f32.mrf.mxu0
  %192 = vmatprep.mubr.f32.mxu0 0.0
  %v193 = vand.u32 %v59, 4294901760
  %v194 = vsub.f32 %v59, %v193
  %v195 = vand.u32 %v194, 4294901760
  %v196 = vsub.f32 %v194, %v195
  %v197 = vand.u32 %v196, 4294901760
  %198 = vmatmul.mubr.f32.gmra.mxu0 %v197
  %v199 = vpop.f32.mrf.mxu0
  %v200 = vadd.f32 %v37, %v199
  %v201 = vpop.f32.mrf.mxu0
  %202 = vmatprep.mubr.f32.mxu0 0.0
  %v203 = vand.u32 %v62, 4294901760
  %v204 = vsub.f32 %v62, %v203
  %v205 = vand.u32 %v204, 4294901760
  %v206 = vsub.f32 %v204, %v205
  %v207 = vand.u32 %v206, 4294901760
  %208 = vmatmul.mubr.f32.gmra.mxu0 %v207
  %v209 = vpop.f32.mrf.mxu0
  %v210 = vadd.f32 %v37, %v209
  %v211 = vpop.f32.mrf.mxu0
  %212 = vdwg.mxu0
  %213 = vmatprep.subr.mxu0 0.0
  %214 = vmatpush1.msra.mxu0 0.0
  %215 = vmatprep.subr.mxu0 0.0
  %216 = vmatpush1.msra.mxu0 0.0
  %217 = vmatprep.subr.mxu0 0.0
  %218 = vmatpush1.msra.mxu0 0.0
  %219 = vmatprep.subr.mxu0 0.0
  %220 = vmatpush1.msra.mxu0 0.0
  %221 = vmatprep.subr.mxu0 0.0
  %222 = vmatpush1.msra.mxu0 0.0
  %223 = vmatprep.subr.mxu0 0.0
  %224 = vmatpush1.msra.mxu0 0.0
  %225 = vmatprep.subr.mxu0 0.0
  %226 = vmatpush1.msra.mxu0 0.0
  %227 = vmatprep.subr.mxu0 0.0
  %228 = vmatpush1.msra.mxu0 0.0
  %229 = vmatprep.subr.mxu0 0.0
  %230 = vmatpush1.msra.mxu0 0.0
  %231 = vmatprep.subr.mxu0 0.0
  %232 = vmatpush1.msra.mxu0 0.0
  %233 = vmatprep.subr.mxu0 0.0
  %234 = vmatpush1.msra.mxu0 0.0
  %235 = vmatprep.subr.mxu0 0.0
  %236 = vmatpush1.msra.mxu0 0.0
  %237 = vmatprep.subr.mxu0 0.0
  %v238 = vand.u32 %v31, 4294901760
  %v239 = vsub.f32 %v31, %v238
  %v240 = vand.u32 %v239, 4294901760
  %v241 = vsub.f32 %v239, %v240
  %v242 = vand.u32 %v241, 4294901760
  %243 = vmatpush1.msra.mxu0 %v242
  %244 = vmatprep.subr.mxu0 0.0
  %v245 = vand.u32 %v30, 4294901760
  %v246 = vsub.f32 %v30, %v245
  %v247 = vand.u32 %v246, 4294901760
  %v248 = vsub.f32 %v246, %v247
  %v249 = vand.u32 %v248, 4294901760
  %250 = vmatpush1.msra.mxu0 %v249
  %251 = vmatprep.subr.mxu0 0.0
  %v252 = vand.u32 %v29, 4294901760
  %v253 = vsub.f32 %v29, %v252
  %v254 = vand.u32 %v253, 4294901760
  %v255 = vsub.f32 %v253, %v254
  %v256 = vand.u32 %v255, 4294901760
  %257 = vmatpush1.msra.mxu0 %v256
  %258 = vmatprep.subr.mxu0 0.0
  %v259 = vand.u32 %v28, 4294901760
  %v260 = vsub.f32 %v28, %v259
  %v261 = vand.u32 %v260, 4294901760
  %v262 = vsub.f32 %v260, %v261
  %v263 = vand.u32 %v262, 4294901760
  %264 = vmatpush1.msra.mxu0 %v263
  %265 = vmatprep.subr.mxu0 0.0
  %266 = vmatpush2.msra.mxu0 0.0
  %267 = vmatprep.subr.mxu0 0.0
  %268 = vmatpush2.msra.mxu0 0.0
  %269 = vmatprep.subr.mxu0 0.0
  %270 = vmatpush2.msra.mxu0 0.0
  %271 = vmatprep.subr.mxu0 0.0
  %272 = vmatpush2.msra.mxu0 0.0
  %273 = vmatprep.subr.mxu0 0.0
  %274 = vmatpush2.msra.mxu0 0.0
  %275 = vmatprep.subr.mxu0 0.0
  %276 = vmatpush2.msra.mxu0 0.0
  %277 = vmatprep.subr.mxu0 0.0
  %278 = vmatpush2.msra.mxu0 0.0
  %279 = vmatprep.subr.mxu0 0.0
  %280 = vmatpush2.msra.mxu0 0.0
  %281 = vmatprep.subr.mxu0 0.0
  %282 = vmatpush2.msra.mxu0 0.0
  %283 = vmatprep.subr.mxu0 0.0
  %284 = vmatpush2.msra.mxu0 0.0
  %285 = vmatprep.subr.mxu0 0.0
  %286 = vmatpush2.msra.mxu0 0.0
  %287 = vmatprep.subr.mxu0 0.0
  %288 = vmatpush2.msra.mxu0 0.0
  %289 = vmatprep.subr.mxu0 0.0
  %290 = vmatpush2.msra.mxu0 0.0
  %291 = vmatprep.subr.mxu0 0.0
  %292 = vmatpush2.msra.mxu0 0.0
  %293 = vmatprep.subr.mxu0 0.0
  %294 = vmatpush2.msra.mxu0 0.0
  %295 = vmatprep.subr.mxu0 0.0
  %296 = vmatpush2.msra.mxu0 0.0
  %297 = vmatprep.mubr.f32.mxu0 0.0
  %v298 = vand.u32 %v41, 4294901760
  %299 = vmatmul.mubr.f32.gmra.mxu0 %v298
  %v300 = vpop.f32.mrf.mxu0
  %v301 = vadd.f32 %v140, %v300
  %v302 = vpop.f32.mrf.mxu0
  %303 = vmatprep.mubr.f32.mxu0 0.0
  %v304 = vand.u32 %v44, 4294901760
  %305 = vmatmul.mubr.f32.gmra.mxu0 %v304
  %v306 = vpop.f32.mrf.mxu0
  %v307 = vadd.f32 %v150, %v306
  %v308 = vpop.f32.mrf.mxu0
  %309 = vmatprep.mubr.f32.mxu0 0.0
  %v310 = vand.u32 %v47, 4294901760
  %311 = vmatmul.mubr.f32.gmra.mxu0 %v310
  %v312 = vpop.f32.mrf.mxu0
  %v313 = vadd.f32 %v160, %v312
  %v314 = vpop.f32.mrf.mxu0
  %315 = vmatprep.mubr.f32.mxu0 0.0
  %v316 = vand.u32 %v50, 4294901760
  %317 = vmatmul.mubr.f32.gmra.mxu0 %v316
  %v318 = vpop.f32.mrf.mxu0
  %v319 = vadd.f32 %v170, %v318
  %v320 = vpop.f32.mrf.mxu0
  %321 = vmatprep.mubr.f32.mxu0 0.0
  %v322 = vand.u32 %v53, 4294901760
  %323 = vmatmul.mubr.f32.gmra.mxu0 %v322
  %v324 = vpop.f32.mrf.mxu0
  %v325 = vadd.f32 %v180, %v324
  %v326 = vpop.f32.mrf.mxu0
  %327 = vmatprep.mubr.f32.mxu0 0.0
  %v328 = vand.u32 %v56, 4294901760
  %329 = vmatmul.mubr.f32.gmra.mxu0 %v328
  %v330 = vpop.f32.mrf.mxu0
  %v331 = vadd.f32 %v190, %v330
  %v332 = vpop.f32.mrf.mxu0
  %333 = vmatprep.mubr.f32.mxu0 0.0
  %v334 = vand.u32 %v59, 4294901760
  %335 = vmatmul.mubr.f32.gmra.mxu0 %v334
  %v336 = vpop.f32.mrf.mxu0
  %v337 = vadd.f32 %v200, %v336
  %v338 = vpop.f32.mrf.mxu0
  %339 = vmatprep.mubr.f32.mxu0 0.0
  %v340 = vand.u32 %v62, 4294901760
  %341 = vmatmul.mubr.f32.gmra.mxu0 %v340
  %v342 = vpop.f32.mrf.mxu0
  %v343 = vadd.f32 %v210, %v342
  %v344 = vpop.f32.mrf.mxu0
  %345 = vdwg.mxu0
  %346 = vmatprep.subr.mxu0 0.0
  %347 = vmatpush1.msra.mxu0 0.0
  %348 = vmatprep.subr.mxu0 0.0
  %349 = vmatpush1.msra.mxu0 0.0
  %350 = vmatprep.subr.mxu0 0.0
  %351 = vmatpush1.msra.mxu0 0.0
  %352 = vmatprep.subr.mxu0 0.0
  %353 = vmatpush1.msra.mxu0 0.0
  %354 = vmatprep.subr.mxu0 0.0
  %355 = vmatpush1.msra.mxu0 0.0
  %356 = vmatprep.subr.mxu0 0.0
  %357 = vmatpush1.msra.mxu0 0.0
  %358 = vmatprep.subr.mxu0 0.0
  %359 = vmatpush1.msra.mxu0 0.0
  %360 = vmatprep.subr.mxu0 0.0
  %361 = vmatpush1.msra.mxu0 0.0
  %362 = vmatprep.subr.mxu0 0.0
  %363 = vmatpush1.msra.mxu0 0.0
  %364 = vmatprep.subr.mxu0 0.0
  %365 = vmatpush1.msra.mxu0 0.0
  %366 = vmatprep.subr.mxu0 0.0
  %367 = vmatpush1.msra.mxu0 0.0
  %368 = vmatprep.subr.mxu0 0.0
  %369 = vmatpush1.msra.mxu0 0.0
  %370 = vmatprep.subr.mxu0 0.0
  %v371 = vand.u32 %v31, 4294901760
  %v372 = vsub.f32 %v31, %v371
  %373 = vmatpush1.msra.mxu0 %v372
  %374 = vmatprep.subr.mxu0 0.0
  %v375 = vand.u32 %v30, 4294901760
  %v376 = vsub.f32 %v30, %v375
  %377 = vmatpush1.msra.mxu0 %v376
  %378 = vmatprep.subr.mxu0 0.0
  %v379 = vand.u32 %v29, 4294901760
  %v380 = vsub.f32 %v29, %v379
  %381 = vmatpush1.msra.mxu0 %v380
  %382 = vmatprep.subr.mxu0 0.0
  %v383 = vand.u32 %v28, 4294901760
  %v384 = vsub.f32 %v28, %v383
  %385 = vmatpush1.msra.mxu0 %v384
  %386 = vmatprep.subr.mxu0 0.0
  %387 = vmatpush2.msra.mxu0 0.0
  %388 = vmatprep.subr.mxu0 0.0
  %389 = vmatpush2.msra.mxu0 0.0
  %390 = vmatprep.subr.mxu0 0.0
  %391 = vmatpush2.msra.mxu0 0.0
  %392 = vmatprep.subr.mxu0 0.0
  %393 = vmatpush2.msra.mxu0 0.0
  %394 = vmatprep.subr.mxu0 0.0
  %395 = vmatpush2.msra.mxu0 0.0
  %396 = vmatprep.subr.mxu0 0.0
  %397 = vmatpush2.msra.mxu0 0.0
  %398 = vmatprep.subr.mxu0 0.0
  %399 = vmatpush2.msra.mxu0 0.0
  %400 = vmatprep.subr.mxu0 0.0
  %401 = vmatpush2.msra.mxu0 0.0
  %402 = vmatprep.subr.mxu0 0.0
  %403 = vmatpush2.msra.mxu0 0.0
  %404 = vmatprep.subr.mxu0 0.0
  %405 = vmatpush2.msra.mxu0 0.0
  %406 = vmatprep.subr.mxu0 0.0
  %407 = vmatpush2.msra.mxu0 0.0
  %408 = vmatprep.subr.mxu0 0.0
  %409 = vmatpush2.msra.mxu0 0.0
  %410 = vmatprep.subr.mxu0 0.0
  %411 = vmatpush2.msra.mxu0 0.0
  %412 = vmatprep.subr.mxu0 0.0
  %413 = vmatpush2.msra.mxu0 0.0
  %414 = vmatprep.subr.mxu0 0.0
  %415 = vmatpush2.msra.mxu0 0.0
  %416 = vmatprep.subr.mxu0 0.0
  %417 = vmatpush2.msra.mxu0 0.0
  %418 = vmatprep.mubr.f32.mxu0 0.0
  %v419 = vand.u32 %v41, 4294901760
  %v420 = vsub.f32 %v41, %v419
  %421 = vmatmul.mubr.f32.gmra.mxu0 %v420
  %v422 = vpop.f32.mrf.mxu0
  %v423 = vadd.f32 %v301, %v422
  %v424 = vpop.f32.mrf.mxu0
  %425 = vmatprep.mubr.f32.mxu0 0.0
  %v426 = vand.u32 %v44, 4294901760
  %v427 = vsub.f32 %v44, %v426
  %428 = vmatmul.mubr.f32.gmra.mxu0 %v427
  %v429 = vpop.f32.mrf.mxu0
  %v430 = vadd.f32 %v307, %v429
  %v431 = vpop.f32.mrf.mxu0
  %432 = vmatprep.mubr.f32.mxu0 0.0
  %v433 = vand.u32 %v47, 4294901760
  %v434 = vsub.f32 %v47, %v433
  %435 = vmatmul.mubr.f32.gmra.mxu0 %v434
  %v436 = vpop.f32.mrf.mxu0
  %v437 = vadd.f32 %v313, %v436
  %v438 = vpop.f32.mrf.mxu0
  %439 = vmatprep.mubr.f32.mxu0 0.0
  %v440 = vand.u32 %v50, 4294901760
  %v441 = vsub.f32 %v50, %v440
  %442 = vmatmul.mubr.f32.gmra.mxu0 %v441
  %v443 = vpop.f32.mrf.mxu0
  %v444 = vadd.f32 %v319, %v443
  %v445 = vpop.f32.mrf.mxu0
  %446 = vmatprep.mubr.f32.mxu0 0.0
  %v447 = vand.u32 %v53, 4294901760
  %v448 = vsub.f32 %v53, %v447
  %449 = vmatmul.mubr.f32.gmra.mxu0 %v448
  %v450 = vpop.f32.mrf.mxu0
  %v451 = vadd.f32 %v325, %v450
  %v452 = vpop.f32.mrf.mxu0
  %453 = vmatprep.mubr.f32.mxu0 0.0
  %v454 = vand.u32 %v56, 4294901760
  %v455 = vsub.f32 %v56, %v454
  %456 = vmatmul.mubr.f32.gmra.mxu0 %v455
  %v457 = vpop.f32.mrf.mxu0
  %v458 = vadd.f32 %v331, %v457
  %v459 = vpop.f32.mrf.mxu0
  %460 = vmatprep.mubr.f32.mxu0 0.0
  %v461 = vand.u32 %v59, 4294901760
  %v462 = vsub.f32 %v59, %v461
  %463 = vmatmul.mubr.f32.gmra.mxu0 %v462
  %v464 = vpop.f32.mrf.mxu0
  %v465 = vadd.f32 %v337, %v464
  %v466 = vpop.f32.mrf.mxu0
  %467 = vmatprep.mubr.f32.mxu0 0.0
  %v468 = vand.u32 %v62, 4294901760
  %v469 = vsub.f32 %v62, %v468
  %470 = vmatmul.mubr.f32.gmra.mxu0 %v469
  %v471 = vpop.f32.mrf.mxu0
  %v472 = vadd.f32 %v343, %v471
  %v473 = vpop.f32.mrf.mxu0
  %474 = vdwg.mxu0
  %475 = vmatprep.subr.mxu0 0.0
  %476 = vmatpush1.msra.mxu0 0.0
  %477 = vmatprep.subr.mxu0 0.0
  %478 = vmatpush1.msra.mxu0 0.0
  %479 = vmatprep.subr.mxu0 0.0
  %480 = vmatpush1.msra.mxu0 0.0
  %481 = vmatprep.subr.mxu0 0.0
  %482 = vmatpush1.msra.mxu0 0.0
  %483 = vmatprep.subr.mxu0 0.0
  %484 = vmatpush1.msra.mxu0 0.0
  %485 = vmatprep.subr.mxu0 0.0
  %486 = vmatpush1.msra.mxu0 0.0
  %487 = vmatprep.subr.mxu0 0.0
  %488 = vmatpush1.msra.mxu0 0.0
  %489 = vmatprep.subr.mxu0 0.0
  %490 = vmatpush1.msra.mxu0 0.0
  %491 = vmatprep.subr.mxu0 0.0
  %492 = vmatpush1.msra.mxu0 0.0
  %493 = vmatprep.subr.mxu0 0.0
  %494 = vmatpush1.msra.mxu0 0.0
  %495 = vmatprep.subr.mxu0 0.0
  %496 = vmatpush1.msra.mxu0 0.0
  %497 = vmatprep.subr.mxu0 0.0
  %498 = vmatpush1.msra.mxu0 0.0
  %499 = vmatprep.subr.mxu0 0.0
  %v500 = vand.u32 %v31, 4294901760
  %501 = vmatpush1.msra.mxu0 %v500
  %502 = vmatprep.subr.mxu0 0.0
  %v503 = vand.u32 %v30, 4294901760
  %504 = vmatpush1.msra.mxu0 %v503
  %505 = vmatprep.subr.mxu0 0.0
  %v506 = vand.u32 %v29, 4294901760
  %507 = vmatpush1.msra.mxu0 %v506
  %508 = vmatprep.subr.mxu0 0.0
  %v509 = vand.u32 %v28, 4294901760
  %510 = vmatpush1.msra.mxu0 %v509
  %511 = vmatprep.subr.mxu0 0.0
  %512 = vmatpush2.msra.mxu0 0.0
  %513 = vmatprep.subr.mxu0 0.0
  %514 = vmatpush2.msra.mxu0 0.0
  %515 = vmatprep.subr.mxu0 0.0
  %516 = vmatpush2.msra.mxu0 0.0
  %517 = vmatprep.subr.mxu0 0.0
  %518 = vmatpush2.msra.mxu0 0.0
  %519 = vmatprep.subr.mxu0 0.0
  %520 = vmatpush2.msra.mxu0 0.0
  %521 = vmatprep.subr.mxu0 0.0
  %522 = vmatpush2.msra.mxu0 0.0
  %523 = vmatprep.subr.mxu0 0.0
  %524 = vmatpush2.msra.mxu0 0.0
  %525 = vmatprep.subr.mxu0 0.0
  %526 = vmatpush2.msra.mxu0 0.0
  %527 = vmatprep.subr.mxu0 0.0
  %528 = vmatpush2.msra.mxu0 0.0
  %529 = vmatprep.subr.mxu0 0.0
  %530 = vmatpush2.msra.mxu0 0.0
  %531 = vmatprep.subr.mxu0 0.0
  %532 = vmatpush2.msra.mxu0 0.0
  %533 = vmatprep.subr.mxu0 0.0
  %534 = vmatpush2.msra.mxu0 0.0
  %535 = vmatprep.subr.mxu0 0.0
  %536 = vmatpush2.msra.mxu0 0.0
  %537 = vmatprep.subr.mxu0 0.0
  %538 = vmatpush2.msra.mxu0 0.0
  %539 = vmatprep.subr.mxu0 0.0
  %540 = vmatpush2.msra.mxu0 0.0
  %541 = vmatprep.subr.mxu0 0.0
  %542 = vmatpush2.msra.mxu0 0.0
  %543 = vmatprep.mubr.f32.mxu0 0.0
  %v544 = vand.u32 %v41, 4294901760
  %v545 = vsub.f32 %v41, %v544
  %v546 = vand.u32 %v545, 4294901760
  %547 = vmatmul.mubr.f32.gmra.mxu0 %v546
  %v548 = vpop.f32.mrf.mxu0
  %v549 = vadd.f32 %v423, %v548
  %v550 = vpop.f32.mrf.mxu0
  %551 = vmatprep.mubr.f32.mxu0 0.0
  %v552 = vand.u32 %v44, 4294901760
  %v553 = vsub.f32 %v44, %v552
  %v554 = vand.u32 %v553, 4294901760
  %555 = vmatmul.mubr.f32.gmra.mxu0 %v554
  %v556 = vpop.f32.mrf.mxu0
  %v557 = vadd.f32 %v430, %v556
  %v558 = vpop.f32.mrf.mxu0
  %559 = vmatprep.mubr.f32.mxu0 0.0
  %v560 = vand.u32 %v47, 4294901760
  %v561 = vsub.f32 %v47, %v560
  %v562 = vand.u32 %v561, 4294901760
  %563 = vmatmul.mubr.f32.gmra.mxu0 %v562
  %v564 = vpop.f32.mrf.mxu0
  %v565 = vadd.f32 %v437, %v564
  %v566 = vpop.f32.mrf.mxu0
  %567 = vmatprep.mubr.f32.mxu0 0.0
  %v568 = vand.u32 %v50, 4294901760
  %v569 = vsub.f32 %v50, %v568
  %v570 = vand.u32 %v569, 4294901760
  %571 = vmatmul.mubr.f32.gmra.mxu0 %v570
  %v572 = vpop.f32.mrf.mxu0
  %v573 = vadd.f32 %v444, %v572
  %v574 = vpop.f32.mrf.mxu0
  %575 = vmatprep.mubr.f32.mxu0 0.0
  %v576 = vand.u32 %v53, 4294901760
  %v577 = vsub.f32 %v53, %v576
  %v578 = vand.u32 %v577, 4294901760
  %579 = vmatmul.mubr.f32.gmra.mxu0 %v578
  %v580 = vpop.f32.mrf.mxu0
  %v581 = vadd.f32 %v451, %v580
  %v582 = vpop.f32.mrf.mxu0
  %583 = vmatprep.mubr.f32.mxu0 0.0
  %v584 = vand.u32 %v56, 4294901760
  %v585 = vsub.f32 %v56, %v584
  %v586 = vand.u32 %v585, 4294901760
  %587 = vmatmul.mubr.f32.gmra.mxu0 %v586
  %v588 = vpop.f32.mrf.mxu0
  %v589 = vadd.f32 %v458, %v588
  %v590 = vpop.f32.mrf.mxu0
  %591 = vmatprep.mubr.f32.mxu0 0.0
  %v592 = vand.u32 %v59, 4294901760
  %v593 = vsub.f32 %v59, %v592
  %v594 = vand.u32 %v593, 4294901760
  %595 = vmatmul.mubr.f32.gmra.mxu0 %v594
  %v596 = vpop.f32.mrf.mxu0
  %v597 = vadd.f32 %v465, %v596
  %v598 = vpop.f32.mrf.mxu0
  %599 = vmatprep.mubr.f32.mxu0 0.0
  %v600 = vand.u32 %v62, 4294901760
  %v601 = vsub.f32 %v62, %v600
  %v602 = vand.u32 %v601, 4294901760
  %603 = vmatmul.mubr.f32.gmra.mxu0 %v602
  %v604 = vpop.f32.mrf.mxu0
  %v605 = vadd.f32 %v472, %v604
  %v606 = vpop.f32.mrf.mxu0
  %607 = vdwg.mxu0
  %608 = vmatprep.subr.mxu0 0.0
  %609 = vmatpush1.msra.mxu0 0.0
  %610 = vmatprep.subr.mxu0 0.0
  %611 = vmatpush1.msra.mxu0 0.0
  %612 = vmatprep.subr.mxu0 0.0
  %613 = vmatpush1.msra.mxu0 0.0
  %614 = vmatprep.subr.mxu0 0.0
  %615 = vmatpush1.msra.mxu0 0.0
  %616 = vmatprep.subr.mxu0 0.0
  %617 = vmatpush1.msra.mxu0 0.0
  %618 = vmatprep.subr.mxu0 0.0
  %619 = vmatpush1.msra.mxu0 0.0
  %620 = vmatprep.subr.mxu0 0.0
  %621 = vmatpush1.msra.mxu0 0.0
  %622 = vmatprep.subr.mxu0 0.0
  %623 = vmatpush1.msra.mxu0 0.0
  %624 = vmatprep.subr.mxu0 0.0
  %625 = vmatpush1.msra.mxu0 0.0
  %626 = vmatprep.subr.mxu0 0.0
  %627 = vmatpush1.msra.mxu0 0.0
  %628 = vmatprep.subr.mxu0 0.0
  %629 = vmatpush1.msra.mxu0 0.0
  %630 = vmatprep.subr.mxu0 0.0
  %631 = vmatpush1.msra.mxu0 0.0
  %632 = vmatprep.subr.mxu0 0.0
  %v633 = vand.u32 %v31, 4294901760
  %v634 = vsub.f32 %v31, %v633
  %v635 = vand.u32 %v634, 4294901760
  %636 = vmatpush1.msra.mxu0 %v635
  %637 = vmatprep.subr.mxu0 0.0
  %v638 = vand.u32 %v30, 4294901760
  %v639 = vsub.f32 %v30, %v638
  %v640 = vand.u32 %v639, 4294901760
  %641 = vmatpush1.msra.mxu0 %v640
  %642 = vmatprep.subr.mxu0 0.0
  %v643 = vand.u32 %v29, 4294901760
  %v644 = vsub.f32 %v29, %v643
  %v645 = vand.u32 %v644, 4294901760
  %646 = vmatpush1.msra.mxu0 %v645
  %647 = vmatprep.subr.mxu0 0.0
  %v648 = vand.u32 %v28, 4294901760
  %v649 = vsub.f32 %v28, %v648
  %v650 = vand.u32 %v649, 4294901760
  %651 = vmatpush1.msra.mxu0 %v650
  %652 = vmatprep.subr.mxu0 0.0
  %653 = vmatpush2.msra.mxu0 0.0
  %654 = vmatprep.subr.mxu0 0.0
  %655 = vmatpush2.msra.mxu0 0.0
  %656 = vmatprep.subr.mxu0 0.0
  %657 = vmatpush2.msra.mxu0 0.0
  %658 = vmatprep.subr.mxu0 0.0
  %659 = vmatpush2.msra.mxu0 0.0
  %660 = vmatprep.subr.mxu0 0.0
  %661 = vmatpush2.msra.mxu0 0.0
  %662 = vmatprep.subr.mxu0 0.0
  %663 = vmatpush2.msra.mxu0 0.0
  %664 = vmatprep.subr.mxu0 0.0
  %665 = vmatpush2.msra.mxu0 0.0
  %666 = vmatprep.subr.mxu0 0.0
  %667 = vmatpush2.msra.mxu0 0.0
  %668 = vmatprep.subr.mxu0 0.0
  %669 = vmatpush2.msra.mxu0 0.0
  %670 = vmatprep.subr.mxu0 0.0
  %671 = vmatpush2.msra.mxu0 0.0
  %672 = vmatprep.subr.mxu0 0.0
  %673 = vmatpush2.msra.mxu0 0.0
  %674 = vmatprep.subr.mxu0 0.0
  %675 = vmatpush2.msra.mxu0 0.0
  %676 = vmatprep.subr.mxu0 0.0
  %677 = vmatpush2.msra.mxu0 0.0
  %678 = vmatprep.subr.mxu0 0.0
  %679 = vmatpush2.msra.mxu0 0.0
  %680 = vmatprep.subr.mxu0 0.0
  %681 = vmatpush2.msra.mxu0 0.0
  %682 = vmatprep.subr.mxu0 0.0
  %683 = vmatpush2.msra.mxu0 0.0
  %684 = vmatprep.mubr.f32.mxu0 0.0
  %v685 = vand.u32 %v41, 4294901760
  %686 = vmatmul.mubr.f32.gmra.mxu0 %v685
  %v687 = vpop.f32.mrf.mxu0
  %v688 = vadd.f32 %v549, %v687
  %v689 = vpop.f32.mrf.mxu0
  %690 = vmatprep.mubr.f32.mxu0 0.0
  %v691 = vand.u32 %v44, 4294901760
  %692 = vmatmul.mubr.f32.gmra.mxu0 %v691
  %v693 = vpop.f32.mrf.mxu0
  %v694 = vadd.f32 %v557, %v693
  %v695 = vpop.f32.mrf.mxu0
  %696 = vmatprep.mubr.f32.mxu0 0.0
  %v697 = vand.u32 %v47, 4294901760
  %698 = vmatmul.mubr.f32.gmra.mxu0 %v697
  %v699 = vpop.f32.mrf.mxu0
  %v700 = vadd.f32 %v565, %v699
  %v701 = vpop.f32.mrf.mxu0
  %702 = vmatprep.mubr.f32.mxu0 0.0
  %v703 = vand.u32 %v50, 4294901760
  %704 = vmatmul.mubr.f32.gmra.mxu0 %v703
  %v705 = vpop.f32.mrf.mxu0
  %v706 = vadd.f32 %v573, %v705
  %v707 = vpop.f32.mrf.mxu0
  %708 = vmatprep.mubr.f32.mxu0 0.0
  %v709 = vand.u32 %v53, 4294901760
  %710 = vmatmul.mubr.f32.gmra.mxu0 %v709
  %v711 = vpop.f32.mrf.mxu0
  %v712 = vadd.f32 %v581, %v711
  %v713 = vpop.f32.mrf.mxu0
  %714 = vmatprep.mubr.f32.mxu0 0.0
  %v715 = vand.u32 %v56, 4294901760
  %716 = vmatmul.mubr.f32.gmra.mxu0 %v715
  %v717 = vpop.f32.mrf.mxu0
  %v718 = vadd.f32 %v589, %v717
  %v719 = vpop.f32.mrf.mxu0
  %720 = vmatprep.mubr.f32.mxu0 0.0
  %v721 = vand.u32 %v59, 4294901760
  %722 = vmatmul.mubr.f32.gmra.mxu0 %v721
  %v723 = vpop.f32.mrf.mxu0
  %v724 = vadd.f32 %v597, %v723
  %v725 = vpop.f32.mrf.mxu0
  %726 = vmatprep.mubr.f32.mxu0 0.0
  %v727 = vand.u32 %v62, 4294901760
  %728 = vmatmul.mubr.f32.gmra.mxu0 %v727
  %v729 = vpop.f32.mrf.mxu0
  %v730 = vadd.f32 %v605, %v729
  %v731 = vpop.f32.mrf.mxu0
  %732 = vdwg.mxu0
  %733 = vmatprep.subr.mxu0 0.0
  %734 = vmatpush1.msra.mxu0 0.0
  %735 = vmatprep.subr.mxu0 0.0
  %736 = vmatpush1.msra.mxu0 0.0
  %737 = vmatprep.subr.mxu0 0.0
  %738 = vmatpush1.msra.mxu0 0.0
  %739 = vmatprep.subr.mxu0 0.0
  %740 = vmatpush1.msra.mxu0 0.0
  %741 = vmatprep.subr.mxu0 0.0
  %742 = vmatpush1.msra.mxu0 0.0
  %743 = vmatprep.subr.mxu0 0.0
  %744 = vmatpush1.msra.mxu0 0.0
  %745 = vmatprep.subr.mxu0 0.0
  %746 = vmatpush1.msra.mxu0 0.0
  %747 = vmatprep.subr.mxu0 0.0
  %748 = vmatpush1.msra.mxu0 0.0
  %749 = vmatprep.subr.mxu0 0.0
  %750 = vmatpush1.msra.mxu0 0.0
  %751 = vmatprep.subr.mxu0 0.0
  %752 = vmatpush1.msra.mxu0 0.0
  %753 = vmatprep.subr.mxu0 0.0
  %754 = vmatpush1.msra.mxu0 0.0
  %755 = vmatprep.subr.mxu0 0.0
  %756 = vmatpush1.msra.mxu0 0.0
  %757 = vmatprep.subr.mxu0 0.0
  %v758 = vand.u32 %v31, 4294901760
  %759 = vmatpush1.msra.mxu0 %v758
  %760 = vmatprep.subr.mxu0 0.0
  %v761 = vand.u32 %v30, 4294901760
  %762 = vmatpush1.msra.mxu0 %v761
  %763 = vmatprep.subr.mxu0 0.0
  %v764 = vand.u32 %v29, 4294901760
  %765 = vmatpush1.msra.mxu0 %v764
  %766 = vmatprep.subr.mxu0 0.0
  %v767 = vand.u32 %v28, 4294901760
  %768 = vmatpush1.msra.mxu0 %v767
  %769 = vmatprep.subr.mxu0 0.0
  %770 = vmatpush2.msra.mxu0 0.0
  %771 = vmatprep.subr.mxu0 0.0
  %772 = vmatpush2.msra.mxu0 0.0
  %773 = vmatprep.subr.mxu0 0.0
  %774 = vmatpush2.msra.mxu0 0.0
  %775 = vmatprep.subr.mxu0 0.0
  %776 = vmatpush2.msra.mxu0 0.0
  %777 = vmatprep.subr.mxu0 0.0
  %778 = vmatpush2.msra.mxu0 0.0
  %779 = vmatprep.subr.mxu0 0.0
  %780 = vmatpush2.msra.mxu0 0.0
  %781 = vmatprep.subr.mxu0 0.0
  %782 = vmatpush2.msra.mxu0 0.0
  %783 = vmatprep.subr.mxu0 0.0
  %784 = vmatpush2.msra.mxu0 0.0
  %785 = vmatprep.subr.mxu0 0.0
  %786 = vmatpush2.msra.mxu0 0.0
  %787 = vmatprep.subr.mxu0 0.0
  %788 = vmatpush2.msra.mxu0 0.0
  %789 = vmatprep.subr.mxu0 0.0
  %790 = vmatpush2.msra.mxu0 0.0
  %791 = vmatprep.subr.mxu0 0.0
  %792 = vmatpush2.msra.mxu0 0.0
  %793 = vmatprep.subr.mxu0 0.0
  %794 = vmatpush2.msra.mxu0 0.0
  %795 = vmatprep.subr.mxu0 0.0
  %796 = vmatpush2.msra.mxu0 0.0
  %797 = vmatprep.subr.mxu0 0.0
  %798 = vmatpush2.msra.mxu0 0.0
  %799 = vmatprep.subr.mxu0 0.0
  %800 = vmatpush2.msra.mxu0 0.0
  %801 = vmatprep.mubr.f32.mxu0 0.0
  %v802 = vand.u32 %v41, 4294901760
  %803 = vmatmul.mubr.f32.gmra.mxu0 %v802
  %v804 = vpop.f32.mrf.mxu0
  %v805 = vadd.f32 %v688, %v804
  %v806 = vpop.f32.mrf.mxu0
  %807 = vmatprep.mubr.f32.mxu0 0.0
  %v808 = vand.u32 %v44, 4294901760
  %809 = vmatmul.mubr.f32.gmra.mxu0 %v808
  %v810 = vpop.f32.mrf.mxu0
  %v811 = vadd.f32 %v694, %v810
  %v812 = vpop.f32.mrf.mxu0
  %813 = vmatprep.mubr.f32.mxu0 0.0
  %v814 = vand.u32 %v47, 4294901760
  %815 = vmatmul.mubr.f32.gmra.mxu0 %v814
  %v816 = vpop.f32.mrf.mxu0
  %v817 = vadd.f32 %v700, %v816
  %v818 = vpop.f32.mrf.mxu0
  %819 = vmatprep.mubr.f32.mxu0 0.0
  %v820 = vand.u32 %v50, 4294901760
  %821 = vmatmul.mubr.f32.gmra.mxu0 %v820
  %v822 = vpop.f32.mrf.mxu0
  %v823 = vadd.f32 %v706, %v822
  %v824 = vpop.f32.mrf.mxu0
  %825 = vmatprep.mubr.f32.mxu0 0.0
  %v826 = vand.u32 %v53, 4294901760
  %827 = vmatmul.mubr.f32.gmra.mxu0 %v826
  %v828 = vpop.f32.mrf.mxu0
  %v829 = vadd.f32 %v712, %v828
  %v830 = vpop.f32.mrf.mxu0
  %831 = vmatprep.mubr.f32.mxu0 0.0
  %v832 = vand.u32 %v56, 4294901760
  %833 = vmatmul.mubr.f32.gmra.mxu0 %v832
  %v834 = vpop.f32.mrf.mxu0
  %v835 = vadd.f32 %v718, %v834
  %v836 = vpop.f32.mrf.mxu0
  %837 = vmatprep.mubr.f32.mxu0 0.0
  %v838 = vand.u32 %v59, 4294901760
  %839 = vmatmul.mubr.f32.gmra.mxu0 %v838
  %v840 = vpop.f32.mrf.mxu0
  %v841 = vadd.f32 %v724, %v840
  %v842 = vpop.f32.mrf.mxu0
  %843 = vmatprep.mubr.f32.mxu0 0.0
  %v844 = vand.u32 %v62, 4294901760
  %845 = vmatmul.mubr.f32.gmra.mxu0 %v844
  %v846 = vpop.f32.mrf.mxu0
  %v847 = vadd.f32 %v730, %v846
  %v848 = vpop.f32.mrf.mxu0
  %849 = vdwg.mxu0
  %v850 = vsub.f32 %v805, 0.5
  %v851 = vfloor.f32 %v850
  %v852 = vadd.f32 %v851, 1.0
  %v853 = vmax.f32 %v852, 0.0
  %v854 = vmin.f32 %v853, 4.0
  %vm855 = vcmask 130048
  %856 = vst.msk [vmem:[#allocation2] sm:$0xff] %vm855, %v854
  %vm857 = vcmp.gt.f32.partialorder %v854, 0.0
  %v858 = vsel %vm857, 1, 0
  %v859 = vcvt.s32.f32 %v858
  %v860 = vsub.f32 1.0, %v859
  %v861 = vmul.f32 %v860, 0.25
  %v862 = vmul.f32 %v805, %v861
  %v863 = vadd.f32 %v862, %v811
  %v864 = vsub.f32 %v863, 0.5
  %v865 = vfloor.f32 %v864
  %v866 = vadd.f32 %v865, 1.0
  %v867 = vmax.f32 %v866, 0.0
  %v868 = vmin.f32 %v867, 4.0
  %869 = vst.msk [vmem:[#allocation2 + $0x8] sm:$0xff] %vm855, %v868
  %vm870 = vcmp.gt.f32.partialorder %v868, 0.0
  %v871 = vsel %vm870, 1, 0
  %v872 = vcvt.s32.f32 %v871
  %v873 = vsub.f32 1.0, %v872
  %v874 = vmul.f32 %v873, 0.25
  %v875 = vmul.f32 %v863, %v874
  %v876 = vadd.f32 %v875, %v817
  %v877 = vsub.f32 %v876, 0.5
  %v878 = vfloor.f32 %v877
  %v879 = vadd.f32 %v878, 1.0
  %v880 = vmax.f32 %v879, 0.0
  %v881 = vmin.f32 %v880, 4.0
  %882 = vst.msk [vmem:[#allocation2 + $0x10] sm:$0xff] %vm855, %v881
  %vm883 = vcmp.gt.f32.partialorder %v881, 0.0
  %v884 = vsel %vm883, 1, 0
  %v885 = vcvt.s32.f32 %v884
  %v886 = vsub.f32 1.0, %v885
  %v887 = vmul.f32 %v886, 0.25
  %v888 = vmul.f32 %v876, %v887
  %v889 = vadd.f32 %v888, %v823
  %v890 = vsub.f32 %v889, 0.5
  %v891 = vfloor.f32 %v890
  %v892 = vadd.f32 %v891, 1.0
  %v893 = vmax.f32 %v892, 0.0
  %v894 = vmin.f32 %v893, 4.0
  %895 = vst.msk [vmem:[#allocation2 + $0x18] sm:$0xff] %vm855, %v894
  %vm896 = vcmp.gt.f32.partialorder %v894, 0.0
  %v897 = vsel %vm896, 1, 0
  %v898 = vcvt.s32.f32 %v897
  %v899 = vsub.f32 1.0, %v898
  %v900 = vmul.f32 %v899, 0.25
  %v901 = vmul.f32 %v889, %v900
  %v902 = vadd.f32 %v901, %v829
  %v903 = vsub.f32 %v902, 0.5
  %v904 = vfloor.f32 %v903
  %v905 = vadd.f32 %v904, 1.0
  %v906 = vmax.f32 %v905, 0.0
  %v907 = vmin.f32 %v906, 4.0
  %908 = vst.msk [vmem:[#allocation2 + $0x20] sm:$0xff] %vm855, %v907
  %vm909 = vcmp.gt.f32.partialorder %v907, 0.0
  %v910 = vsel %vm909, 1, 0
  %v911 = vcvt.s32.f32 %v910
  %v912 = vsub.f32 1.0, %v911
  %v913 = vmul.f32 %v912, 0.25
  %v914 = vmul.f32 %v902, %v913
  %v915 = vadd.f32 %v914, %v835
  %v916 = vsub.f32 %v915, 0.5
  %v917 = vfloor.f32 %v916
  %v918 = vadd.f32 %v917, 1.0
  %v919 = vmax.f32 %v918, 0.0
  %v920 = vmin.f32 %v919, 4.0
  %921 = vst.msk [vmem:[#allocation2 + $0x28] sm:$0xff] %vm855, %v920
  %vm922 = vcmp.gt.f32.partialorder %v920, 0.0
  %v923 = vsel %vm922, 1, 0
  %v924 = vcvt.s32.f32 %v923
  %v925 = vsub.f32 1.0, %v924
  %v926 = vmul.f32 %v925, 0.25
  %v927 = vmul.f32 %v915, %v926
  %v928 = vadd.f32 %v927, %v841
  %v929 = vsub.f32 %v928, 0.5
  %v930 = vfloor.f32 %v929
  %v931 = vadd.f32 %v930, 1.0
  %v932 = vmax.f32 %v931, 0.0
  %v933 = vmin.f32 %v932, 4.0
  %934 = vst.msk [vmem:[#allocation2 + $0x30] sm:$0xff] %vm855, %v933
  %vm935 = vcmp.gt.f32.partialorder %v933, 0.0
  %v936 = vsel %vm935, 1, 0
  %v937 = vcvt.s32.f32 %v936
  %v938 = vsub.f32 1.0, %v937
  %v939 = vmul.f32 %v938, 0.25
  %v940 = vmul.f32 %v928, %v939
  %v941 = vadd.f32 %v940, %v847
  %v942 = vsub.f32 %v941, 0.5
  %v943 = vfloor.f32 %v942
  %v944 = vadd.f32 %v943, 1.0
  %v945 = vmax.f32 %v944, 0.0
  %v946 = vmin.f32 %v945, 4.0
  %947 = vst.msk [vmem:[#allocation2 + $0x38] sm:$0xff] %vm855, %v946
  %v948 = vld [vmem:[#allocation2] sm:$0xff]
  %v949 = vld [vmem:[#allocation2 + $0x8] sm:$0xff]
  %v950 = vld [vmem:[#allocation2 + $0x10] sm:$0xff]
  %v951 = vld [vmem:[#allocation2 + $0x18] sm:$0xff]
  %v952 = vld [vmem:[#allocation2 + $0x20] sm:$0xff]
  %v953 = vld [vmem:[#allocation2 + $0x28] sm:$0xff]
  %v954 = vld [vmem:[#allocation2 + $0x30] sm:$0xff]
  %v955 = vld [vmem:[#allocation2 + $0x38] sm:$0xff]
  %v956 = vld [vmem:[%s3] sm:$0xff]
  %v957 = vld [vmem:[%s3 + $0x8] sm:$0xff]
  %v958 = vld [vmem:[%s4] sm:$0x1]
  %v960 = vlaneseq
  %v961 = vshrl.u32 %v960, 7
  %v962 = vsub.s32 0, %v961
  %v963 = vrot.slane %v958, %v962
  %v966 = vsel %vm855, %v948, 0
  %v969 = vsel %vm855, %v949, 0
  %v972 = vsel %vm855, %v950, 0
  %v975 = vsel %vm855, %v951, 0
  %v978 = vsel %vm855, %v952, 0
  %v981 = vsel %vm855, %v953, 0
  %v984 = vsel %vm855, %v954, 0
  %v987 = vsel %vm855, %v955, 0
  %989 = vmatprep.subr.mxu0 0.0
  %990 = vmatpush1.msra.mxu0 0.0
  %991 = vmatprep.subr.mxu0 0.0
  %992 = vmatpush1.msra.mxu0 0.0
  %993 = vmatprep.subr.mxu0 0.0
  %994 = vmatpush1.msra.mxu0 0.0
  %995 = vmatprep.subr.mxu0 0.0
  %996 = vmatpush1.msra.mxu0 0.0
  %997 = vmatprep.subr.mxu0 0.0
  %998 = vmatpush1.msra.mxu0 0.0
  %999 = vmatprep.subr.mxu0 0.0
  %1000 = vmatpush1.msra.mxu0 0.0
  %1001 = vmatprep.subr.mxu0 0.0
  %1002 = vmatpush1.msra.mxu0 0.0
  %1003 = vmatprep.subr.mxu0 0.0
  %1004 = vmatpush1.msra.mxu0 0.0
  %1005 = vmatprep.subr.mxu0 0.0
  %1006 = vmatpush1.msra.mxu0 0.0
  %1007 = vmatprep.subr.mxu0 0.0
  %1008 = vmatpush1.msra.mxu0 0.0
  %1009 = vmatprep.subr.mxu0 0.0
  %1010 = vmatpush1.msra.mxu0 0.0
  %1011 = vmatprep.subr.mxu0 0.0
  %1012 = vmatpush1.msra.mxu0 0.0
  %1013 = vmatprep.subr.mxu0 0.0
  %1014 = vmatpush1.msra.mxu0 0.0
  %1015 = vmatprep.subr.mxu0 0.0
  %1016 = vmatpush1.msra.mxu0 0.0
  %1017 = vmatprep.subr.mxu0 0.0
  %v1018 = vand.u32 %v957, 4294901760
  %1019 = vmatpush1.msra.mxu0 %v1018
  %1020 = vmatprep.subr.mxu0 0.0
  %v1021 = vand.u32 %v956, 4294901760
  %1022 = vmatpush1.msra.mxu0 %v1021
  %1023 = vmatprep.subr.mxu0 0.0
  %1024 = vmatpush2.msra.mxu0 0.0
  %1025 = vmatprep.subr.mxu0 0.0
  %1026 = vmatpush2.msra.mxu0 0.0
  %1027 = vmatprep.subr.mxu0 0.0
  %1028 = vmatpush2.msra.mxu0 0.0
  %1029 = vmatprep.subr.mxu0 0.0
  %1030 = vmatpush2.msra.mxu0 0.0
  %1031 = vmatprep.subr.mxu0 0.0
  %1032 = vmatpush2.msra.mxu0 0.0
  %1033 = vmatprep.subr.mxu0 0.0
  %1034 = vmatpush2.msra.mxu0 0.0
  %1035 = vmatprep.subr.mxu0 0.0
  %1036 = vmatpush2.msra.mxu0 0.0
  %1037 = vmatprep.subr.mxu0 0.0
  %1038 = vmatpush2.msra.mxu0 0.0
  %1039 = vmatprep.subr.mxu0 0.0
  %1040 = vmatpush2.msra.mxu0 0.0
  %1041 = vmatprep.subr.mxu0 0.0
  %1042 = vmatpush2.msra.mxu0 0.0
  %1043 = vmatprep.subr.mxu0 0.0
  %1044 = vmatpush2.msra.mxu0 0.0
  %1045 = vmatprep.subr.mxu0 0.0
  %1046 = vmatpush2.msra.mxu0 0.0
  %1047 = vmatprep.subr.mxu0 0.0
  %1048 = vmatpush2.msra.mxu0 0.0
  %1049 = vmatprep.subr.mxu0 0.0
  %1050 = vmatpush2.msra.mxu0 0.0
  %1051 = vmatprep.subr.mxu0 0.0
  %1052 = vmatpush2.msra.mxu0 0.0
  %1053 = vmatprep.subr.mxu0 0.0
  %1054 = vmatpush2.msra.mxu0 0.0
  %1055 = vmatprep.mubr.f32.mxu0 0.0
  %v1056 = vand.u32 %v966, 4294901760
  %v1057 = vsub.f32 %v966, %v1056
  %v1058 = vand.u32 %v1057, 4294901760
  %v1059 = vsub.f32 %v1057, %v1058
  %v1060 = vand.u32 %v1059, 4294901760
  %1061 = vmatmul.mubr.f32.gmra.mxu0 %v1060
  %v1062 = vpop.f32.mrf.mxu0
  %v1063 = vadd.f32 %v963, %v1062
  %v1064 = vpop.f32.mrf.mxu0
  %1065 = vmatprep.mubr.f32.mxu0 0.0
  %v1066 = vand.u32 %v969, 4294901760
  %v1067 = vsub.f32 %v969, %v1066
  %v1068 = vand.u32 %v1067, 4294901760
  %v1069 = vsub.f32 %v1067, %v1068
  %v1070 = vand.u32 %v1069, 4294901760
  %1071 = vmatmul.mubr.f32.gmra.mxu0 %v1070
  %v1072 = vpop.f32.mrf.mxu0
  %v1073 = vadd.f32 %v963, %v1072
  %v1074 = vpop.f32.mrf.mxu0
  %1075 = vmatprep.mubr.f32.mxu0 0.0
  %v1076 = vand.u32 %v972, 4294901760
  %v1077 = vsub.f32 %v972, %v1076
  %v1078 = vand.u32 %v1077, 4294901760
  %v1079 = vsub.f32 %v1077, %v1078
  %v1080 = vand.u32 %v1079, 4294901760
  %1081 = vmatmul.mubr.f32.gmra.mxu0 %v1080
  %v1082 = vpop.f32.mrf.mxu0
  %v1083 = vadd.f32 %v963, %v1082
  %v1084 = vpop.f32.mrf.mxu0
  %1085 = vmatprep.mubr.f32.mxu0 0.0
  %v1086 = vand.u32 %v975, 4294901760
  %v1087 = vsub.f32 %v975, %v1086
  %v1088 = vand.u32 %v1087, 4294901760
  %v1089 = vsub.f32 %v1087, %v1088
  %v1090 = vand.u32 %v1089, 4294901760
  %1091 = vmatmul.mubr.f32.gmra.mxu0 %v1090
  %v1092 = vpop.f32.mrf.mxu0
  %v1093 = vadd.f32 %v963, %v1092
  %v1094 = vpop.f32.mrf.mxu0
  %1095 = vmatprep.mubr.f32.mxu0 0.0
  %v1096 = vand.u32 %v978, 4294901760
  %v1097 = vsub.f32 %v978, %v1096
  %v1098 = vand.u32 %v1097, 4294901760
  %v1099 = vsub.f32 %v1097, %v1098
  %v1100 = vand.u32 %v1099, 4294901760
  %1101 = vmatmul.mubr.f32.gmra.mxu0 %v1100
  %v1102 = vpop.f32.mrf.mxu0
  %v1103 = vadd.f32 %v963, %v1102
  %v1104 = vpop.f32.mrf.mxu0
  %1105 = vmatprep.mubr.f32.mxu0 0.0
  %v1106 = vand.u32 %v981, 4294901760
  %v1107 = vsub.f32 %v981, %v1106
  %v1108 = vand.u32 %v1107, 4294901760
  %v1109 = vsub.f32 %v1107, %v1108
  %v1110 = vand.u32 %v1109, 4294901760
  %1111 = vmatmul.mubr.f32.gmra.mxu0 %v1110
  %v1112 = vpop.f32.mrf.mxu0
  %v1113 = vadd.f32 %v963, %v1112
  %v1114 = vpop.f32.mrf.mxu0
  %1115 = vmatprep.mubr.f32.mxu0 0.0
  %v1116 = vand.u32 %v984, 4294901760
  %v1117 = vsub.f32 %v984, %v1116
  %v1118 = vand.u32 %v1117, 4294901760
  %v1119 = vsub.f32 %v1117, %v1118
  %v1120 = vand.u32 %v1119, 4294901760
  %1121 = vmatmul.mubr.f32.gmra.mxu0 %v1120
  %v1122 = vpop.f32.mrf.mxu0
  %v1123 = vadd.f32 %v963, %v1122
  %v1124 = vpop.f32.mrf.mxu0
  %1125 = vmatprep.mubr.f32.mxu0 0.0
  %v1126 = vand.u32 %v987, 4294901760
  %v1127 = vsub.f32 %v987, %v1126
  %v1128 = vand.u32 %v1127, 4294901760
  %v1129 = vsub.f32 %v1127, %v1128
  %v1130 = vand.u32 %v1129, 4294901760
  %1131 = vmatmul.mubr.f32.gmra.mxu0 %v1130
  %v1132 = vpop.f32.mrf.mxu0
  %v1133 = vadd.f32 %v963, %v1132
  %v1134 = vpop.f32.mrf.mxu0
  %1135 = vdwg.mxu0
  %1136 = vmatprep.subr.mxu0 0.0
  %1137 = vmatpush1.msra.mxu0 0.0
  %1138 = vmatprep.subr.mxu0 0.0
  %1139 = vmatpush1.msra.mxu0 0.0
  %1140 = vmatprep.subr.mxu0 0.0
  %1141 = vmatpush1.msra.mxu0 0.0
  %1142 = vmatprep.subr.mxu0 0.0
  %1143 = vmatpush1.msra.mxu0 0.0
  %1144 = vmatprep.subr.mxu0 0.0
  %1145 = vmatpush1.msra.mxu0 0.0
  %1146 = vmatprep.subr.mxu0 0.0
  %1147 = vmatpush1.msra.mxu0 0.0
  %1148 = vmatprep.subr.mxu0 0.0
  %1149 = vmatpush1.msra.mxu0 0.0
  %1150 = vmatprep.subr.mxu0 0.0
  %1151 = vmatpush1.msra.mxu0 0.0
  %1152 = vmatprep.subr.mxu0 0.0
  %1153 = vmatpush1.msra.mxu0 0.0
  %1154 = vmatprep.subr.mxu0 0.0
  %1155 = vmatpush1.msra.mxu0 0.0
  %1156 = vmatprep.subr.mxu0 0.0
  %1157 = vmatpush1.msra.mxu0 0.0
  %1158 = vmatprep.subr.mxu0 0.0
  %1159 = vmatpush1.msra.mxu0 0.0
  %1160 = vmatprep.subr.mxu0 0.0
  %1161 = vmatpush1.msra.mxu0 0.0
  %1162 = vmatprep.subr.mxu0 0.0
  %1163 = vmatpush1.msra.mxu0 0.0
  %1164 = vmatprep.subr.mxu0 0.0
  %v1165 = vand.u32 %v957, 4294901760
  %v1166 = vsub.f32 %v957, %v1165
  %v1167 = vand.u32 %v1166, 4294901760
  %v1168 = vsub.f32 %v1166, %v1167
  %v1169 = vand.u32 %v1168, 4294901760
  %1170 = vmatpush1.msra.mxu0 %v1169
  %1171 = vmatprep.subr.mxu0 0.0
  %v1172 = vand.u32 %v956, 4294901760
  %v1173 = vsub.f32 %v956, %v1172
  %v1174 = vand.u32 %v1173, 4294901760
  %v1175 = vsub.f32 %v1173, %v1174
  %v1176 = vand.u32 %v1175, 4294901760
  %1177 = vmatpush1.msra.mxu0 %v1176
  %1178 = vmatprep.subr.mxu0 0.0
  %1179 = vmatpush2.msra.mxu0 0.0
  %1180 = vmatprep.subr.mxu0 0.0
  %1181 = vmatpush2.msra.mxu0 0.0
  %1182 = vmatprep.subr.mxu0 0.0
  %1183 = vmatpush2.msra.mxu0 0.0
  %1184 = vmatprep.subr.mxu0 0.0
  %1185 = vmatpush2.msra.mxu0 0.0
  %1186 = vmatprep.subr.mxu0 0.0
  %1187 = vmatpush2.msra.mxu0 0.0
  %1188 = vmatprep.subr.mxu0 0.0
  %1189 = vmatpush2.msra.mxu0 0.0
  %1190 = vmatprep.subr.mxu0 0.0
  %1191 = vmatpush2.msra.mxu0 0.0
  %1192 = vmatprep.subr.mxu0 0.0
  %1193 = vmatpush2.msra.mxu0 0.0
  %1194 = vmatprep.subr.mxu0 0.0
  %1195 = vmatpush2.msra.mxu0 0.0
  %1196 = vmatprep.subr.mxu0 0.0
  %1197 = vmatpush2.msra.mxu0 0.0
  %1198 = vmatprep.subr.mxu0 0.0
  %1199 = vmatpush2.msra.mxu0 0.0
  %1200 = vmatprep.subr.mxu0 0.0
  %1201 = vmatpush2.msra.mxu0 0.0
  %1202 = vmatprep.subr.mxu0 0.0
  %1203 = vmatpush2.msra.mxu0 0.0
  %1204 = vmatprep.subr.mxu0 0.0
  %1205 = vmatpush2.msra.mxu0 0.0
  %1206 = vmatprep.subr.mxu0 0.0
  %1207 = vmatpush2.msra.mxu0 0.0
  %1208 = vmatprep.subr.mxu0 0.0
  %1209 = vmatpush2.msra.mxu0 0.0
  %1210 = vmatprep.mubr.f32.mxu0 0.0
  %v1211 = vand.u32 %v966, 4294901760
  %1212 = vmatmul.mubr.f32.gmra.mxu0 %v1211
  %v1213 = vpop.f32.mrf.mxu0
  %v1214 = vadd.f32 %v1063, %v1213
  %v1215 = vpop.f32.mrf.mxu0
  %1216 = vmatprep.mubr.f32.mxu0 0.0
  %v1217 = vand.u32 %v969, 4294901760
  %1218 = vmatmul.mubr.f32.gmra.mxu0 %v1217
  %v1219 = vpop.f32.mrf.mxu0
  %v1220 = vadd.f32 %v1073, %v1219
  %v1221 = vpop.f32.mrf.mxu0
  %1222 = vmatprep.mubr.f32.mxu0 0.0
  %v1223 = vand.u32 %v972, 4294901760
  %1224 = vmatmul.mubr.f32.gmra.mxu0 %v1223
  %v1225 = vpop.f32.mrf.mxu0
  %v1226 = vadd.f32 %v1083, %v1225
  %v1227 = vpop.f32.mrf.mxu0
  %1228 = vmatprep.mubr.f32.mxu0 0.0
  %v1229 = vand.u32 %v975, 4294901760
  %1230 = vmatmul.mubr.f32.gmra.mxu0 %v1229
  %v1231 = vpop.f32.mrf.mxu0
  %v1232 = vadd.f32 %v1093, %v1231
  %v1233 = vpop.f32.mrf.mxu0
  %1234 = vmatprep.mubr.f32.mxu0 0.0
  %v1235 = vand.u32 %v978, 4294901760
  %1236 = vmatmul.mubr.f32.gmra.mxu0 %v1235
  %v1237 = vpop.f32.mrf.mxu0
  %v1238 = vadd.f32 %v1103, %v1237
  %v1239 = vpop.f32.mrf.mxu0
  %1240 = vmatprep.mubr.f32.mxu0 0.0
  %v1241 = vand.u32 %v981, 4294901760
  %1242 = vmatmul.mubr.f32.gmra.mxu0 %v1241
  %v1243 = vpop.f32.mrf.mxu0
  %v1244 = vadd.f32 %v1113, %v1243
  %v1245 = vpop.f32.mrf.mxu0
  %1246 = vmatprep.mubr.f32.mxu0 0.0
  %v1247 = vand.u32 %v984, 4294901760
  %1248 = vmatmul.mubr.f32.gmra.mxu0 %v1247
  %v1249 = vpop.f32.mrf.mxu0
  %v1250 = vadd.f32 %v1123, %v1249
  %v1251 = vpop.f32.mrf.mxu0
  %1252 = vmatprep.mubr.f32.mxu0 0.0
  %v1253 = vand.u32 %v987, 4294901760
  %1254 = vmatmul.mubr.f32.gmra.mxu0 %v1253
  %v1255 = vpop.f32.mrf.mxu0
  %v1256 = vadd.f32 %v1133, %v1255
  %v1257 = vpop.f32.mrf.mxu0
  %1258 = vdwg.mxu0
  %1259 = vmatprep.subr.mxu0 0.0
  %1260 = vmatpush1.msra.mxu0 0.0
  %1261 = vmatprep.subr.mxu0 0.0
  %1262 = vmatpush1.msra.mxu0 0.0
  %1263 = vmatprep.subr.mxu0 0.0
  %1264 = vmatpush1.msra.mxu0 0.0
  %1265 = vmatprep.subr.mxu0 0.0
  %1266 = vmatpush1.msra.mxu0 0.0
  %1267 = vmatprep.subr.mxu0 0.0
  %1268 = vmatpush1.msra.mxu0 0.0
  %1269 = vmatprep.subr.mxu0 0.0
  %1270 = vmatpush1.msra.mxu0 0.0
  %1271 = vmatprep.subr.mxu0 0.0
  %1272 = vmatpush1.msra.mxu0 0.0
  %1273 = vmatprep.subr.mxu0 0.0
  %1274 = vmatpush1.msra.mxu0 0.0
  %1275 = vmatprep.subr.mxu0 0.0
  %1276 = vmatpush1.msra.mxu0 0.0
  %1277 = vmatprep.subr.mxu0 0.0
  %1278 = vmatpush1.msra.mxu0 0.0
  %1279 = vmatprep.subr.mxu0 0.0
  %1280 = vmatpush1.msra.mxu0 0.0
  %1281 = vmatprep.subr.mxu0 0.0
  %1282 = vmatpush1.msra.mxu0 0.0
  %1283 = vmatprep.subr.mxu0 0.0
  %1284 = vmatpush1.msra.mxu0 0.0
  %1285 = vmatprep.subr.mxu0 0.0
  %1286 = vmatpush1.msra.mxu0 0.0
  %1287 = vmatprep.subr.mxu0 0.0
  %v1288 = vand.u32 %v957, 4294901760
  %v1289 = vsub.f32 %v957, %v1288
  %1290 = vmatpush1.msra.mxu0 %v1289
  %1291 = vmatprep.subr.mxu0 0.0
  %v1292 = vand.u32 %v956, 4294901760
  %v1293 = vsub.f32 %v956, %v1292
  %1294 = vmatpush1.msra.mxu0 %v1293
  %1295 = vmatprep.subr.mxu0 0.0
  %1296 = vmatpush2.msra.mxu0 0.0
  %1297 = vmatprep.subr.mxu0 0.0
  %1298 = vmatpush2.msra.mxu0 0.0
  %1299 = vmatprep.subr.mxu0 0.0
  %1300 = vmatpush2.msra.mxu0 0.0
  %1301 = vmatprep.subr.mxu0 0.0
  %1302 = vmatpush2.msra.mxu0 0.0
  %1303 = vmatprep.subr.mxu0 0.0
  %1304 = vmatpush2.msra.mxu0 0.0
  %1305 = vmatprep.subr.mxu0 0.0
  %1306 = vmatpush2.msra.mxu0 0.0
  %1307 = vmatprep.subr.mxu0 0.0
  %1308 = vmatpush2.msra.mxu0 0.0
  %1309 = vmatprep.subr.mxu0 0.0
  %1310 = vmatpush2.msra.mxu0 0.0
  %1311 = vmatprep.subr.mxu0 0.0
  %1312 = vmatpush2.msra.mxu0 0.0
  %1313 = vmatprep.subr.mxu0 0.0
  %1314 = vmatpush2.msra.mxu0 0.0
  %1315 = vmatprep.subr.mxu0 0.0
  %1316 = vmatpush2.msra.mxu0 0.0
  %1317 = vmatprep.subr.mxu0 0.0
  %1318 = vmatpush2.msra.mxu0 0.0
  %1319 = vmatprep.subr.mxu0 0.0
  %1320 = vmatpush2.msra.mxu0 0.0
  %1321 = vmatprep.subr.mxu0 0.0
  %1322 = vmatpush2.msra.mxu0 0.0
  %1323 = vmatprep.subr.mxu0 0.0
  %1324 = vmatpush2.msra.mxu0 0.0
  %1325 = vmatprep.subr.mxu0 0.0
  %1326 = vmatpush2.msra.mxu0 0.0
  %1327 = vmatprep.mubr.f32.mxu0 0.0
  %v1328 = vand.u32 %v966, 4294901760
  %v1329 = vsub.f32 %v966, %v1328
  %1330 = vmatmul.mubr.f32.gmra.mxu0 %v1329
  %v1331 = vpop.f32.mrf.mxu0
  %v1332 = vadd.f32 %v1214, %v1331
  %v1333 = vpop.f32.mrf.mxu0
  %1334 = vmatprep.mubr.f32.mxu0 0.0
  %v1335 = vand.u32 %v969, 4294901760
  %v1336 = vsub.f32 %v969, %v1335
  %1337 = vmatmul.mubr.f32.gmra.mxu0 %v1336
  %v1338 = vpop.f32.mrf.mxu0
  %v1339 = vadd.f32 %v1220, %v1338
  %v1340 = vpop.f32.mrf.mxu0
  %1341 = vmatprep.mubr.f32.mxu0 0.0
  %v1342 = vand.u32 %v972, 4294901760
  %v1343 = vsub.f32 %v972, %v1342
  %1344 = vmatmul.mubr.f32.gmra.mxu0 %v1343
  %v1345 = vpop.f32.mrf.mxu0
  %v1346 = vadd.f32 %v1226, %v1345
  %v1347 = vpop.f32.mrf.mxu0
  %1348 = vmatprep.mubr.f32.mxu0 0.0
  %v1349 = vand.u32 %v975, 4294901760
  %v1350 = vsub.f32 %v975, %v1349
  %1351 = vmatmul.mubr.f32.gmra.mxu0 %v1350
  %v1352 = vpop.f32.mrf.mxu0
  %v1353 = vadd.f32 %v1232, %v1352
  %v1354 = vpop.f32.mrf.mxu0
  %1355 = vmatprep.mubr.f32.mxu0 0.0
  %v1356 = vand.u32 %v978, 4294901760
  %v1357 = vsub.f32 %v978, %v1356
  %1358 = vmatmul.mubr.f32.gmra.mxu0 %v1357
  %v1359 = vpop.f32.mrf.mxu0
  %v1360 = vadd.f32 %v1238, %v1359
  %v1361 = vpop.f32.mrf.mxu0
  %1362 = vmatprep.mubr.f32.mxu0 0.0
  %v1363 = vand.u32 %v981, 4294901760
  %v1364 = vsub.f32 %v981, %v1363
  %1365 = vmatmul.mubr.f32.gmra.mxu0 %v1364
  %v1366 = vpop.f32.mrf.mxu0
  %v1367 = vadd.f32 %v1244, %v1366
  %v1368 = vpop.f32.mrf.mxu0
  %1369 = vmatprep.mubr.f32.mxu0 0.0
  %v1370 = vand.u32 %v984, 4294901760
  %v1371 = vsub.f32 %v984, %v1370
  %1372 = vmatmul.mubr.f32.gmra.mxu0 %v1371
  %v1373 = vpop.f32.mrf.mxu0
  %v1374 = vadd.f32 %v1250, %v1373
  %v1375 = vpop.f32.mrf.mxu0
  %1376 = vmatprep.mubr.f32.mxu0 0.0
  %v1377 = vand.u32 %v987, 4294901760
  %v1378 = vsub.f32 %v987, %v1377
  %1379 = vmatmul.mubr.f32.gmra.mxu0 %v1378
  %v1380 = vpop.f32.mrf.mxu0
  %v1381 = vadd.f32 %v1256, %v1380
  %v1382 = vpop.f32.mrf.mxu0
  %1383 = vdwg.mxu0
  %1384 = vmatprep.subr.mxu0 0.0
  %1385 = vmatpush1.msra.mxu0 0.0
  %1386 = vmatprep.subr.mxu0 0.0
  %1387 = vmatpush1.msra.mxu0 0.0
  %1388 = vmatprep.subr.mxu0 0.0
  %1389 = vmatpush1.msra.mxu0 0.0
  %1390 = vmatprep.subr.mxu0 0.0
  %1391 = vmatpush1.msra.mxu0 0.0
  %1392 = vmatprep.subr.mxu0 0.0
  %1393 = vmatpush1.msra.mxu0 0.0
  %1394 = vmatprep.subr.mxu0 0.0
  %1395 = vmatpush1.msra.mxu0 0.0
  %1396 = vmatprep.subr.mxu0 0.0
  %1397 = vmatpush1.msra.mxu0 0.0
  %1398 = vmatprep.subr.mxu0 0.0
  %1399 = vmatpush1.msra.mxu0 0.0
  %1400 = vmatprep.subr.mxu0 0.0
  %1401 = vmatpush1.msra.mxu0 0.0
  %1402 = vmatprep.subr.mxu0 0.0
  %1403 = vmatpush1.msra.mxu0 0.0
  %1404 = vmatprep.subr.mxu0 0.0
  %1405 = vmatpush1.msra.mxu0 0.0
  %1406 = vmatprep.subr.mxu0 0.0
  %1407 = vmatpush1.msra.mxu0 0.0
  %1408 = vmatprep.subr.mxu0 0.0
  %1409 = vmatpush1.msra.mxu0 0.0
  %1410 = vmatprep.subr.mxu0 0.0
  %1411 = vmatpush1.msra.mxu0 0.0
  %1412 = vmatprep.subr.mxu0 0.0
  %v1413 = vand.u32 %v957, 4294901760
  %1414 = vmatpush1.msra.mxu0 %v1413
  %1415 = vmatprep.subr.mxu0 0.0
  %v1416 = vand.u32 %v956, 4294901760
  %1417 = vmatpush1.msra.mxu0 %v1416
  %1418 = vmatprep.subr.mxu0 0.0
  %1419 = vmatpush2.msra.mxu0 0.0
  %1420 = vmatprep.subr.mxu0 0.0
  %1421 = vmatpush2.msra.mxu0 0.0
  %1422 = vmatprep.subr.mxu0 0.0
  %1423 = vmatpush2.msra.mxu0 0.0
  %1424 = vmatprep.subr.mxu0 0.0
  %1425 = vmatpush2.msra.mxu0 0.0
  %1426 = vmatprep.subr.mxu0 0.0
  %1427 = vmatpush2.msra.mxu0 0.0
  %1428 = vmatprep.subr.mxu0 0.0
  %1429 = vmatpush2.msra.mxu0 0.0
  %1430 = vmatprep.subr.mxu0 0.0
  %1431 = vmatpush2.msra.mxu0 0.0
  %1432 = vmatprep.subr.mxu0 0.0
  %1433 = vmatpush2.msra.mxu0 0.0
  %1434 = vmatprep.subr.mxu0 0.0
  %1435 = vmatpush2.msra.mxu0 0.0
  %1436 = vmatprep.subr.mxu0 0.0
  %1437 = vmatpush2.msra.mxu0 0.0
  %1438 = vmatprep.subr.mxu0 0.0
  %1439 = vmatpush2.msra.mxu0 0.0
  %1440 = vmatprep.subr.mxu0 0.0
  %1441 = vmatpush2.msra.mxu0 0.0
  %1442 = vmatprep.subr.mxu0 0.0
  %1443 = vmatpush2.msra.mxu0 0.0
  %1444 = vmatprep.subr.mxu0 0.0
  %1445 = vmatpush2.msra.mxu0 0.0
  %1446 = vmatprep.subr.mxu0 0.0
  %1447 = vmatpush2.msra.mxu0 0.0
  %1448 = vmatprep.subr.mxu0 0.0
  %1449 = vmatpush2.msra.mxu0 0.0
  %1450 = vmatprep.mubr.f32.mxu0 0.0
  %v1451 = vand.u32 %v966, 4294901760
  %v1452 = vsub.f32 %v966, %v1451
  %v1453 = vand.u32 %v1452, 4294901760
  %1454 = vmatmul.mubr.f32.gmra.mxu0 %v1453
  %v1455 = vpop.f32.mrf.mxu0
  %v1456 = vadd.f32 %v1332, %v1455
  %v1457 = vpop.f32.mrf.mxu0
  %1458 = vmatprep.mubr.f32.mxu0 0.0
  %v1459 = vand.u32 %v969, 4294901760
  %v1460 = vsub.f32 %v969, %v1459
  %v1461 = vand.u32 %v1460, 4294901760
  %1462 = vmatmul.mubr.f32.gmra.mxu0 %v1461
  %v1463 = vpop.f32.mrf.mxu0
  %v1464 = vadd.f32 %v1339, %v1463
  %v1465 = vpop.f32.mrf.mxu0
  %1466 = vmatprep.mubr.f32.mxu0 0.0
  %v1467 = vand.u32 %v972, 4294901760
  %v1468 = vsub.f32 %v972, %v1467
  %v1469 = vand.u32 %v1468, 4294901760
  %1470 = vmatmul.mubr.f32.gmra.mxu0 %v1469
  %v1471 = vpop.f32.mrf.mxu0
  %v1472 = vadd.f32 %v1346, %v1471
  %v1473 = vpop.f32.mrf.mxu0
  %1474 = vmatprep.mubr.f32.mxu0 0.0
  %v1475 = vand.u32 %v975, 4294901760
  %v1476 = vsub.f32 %v975, %v1475
  %v1477 = vand.u32 %v1476, 4294901760
  %1478 = vmatmul.mubr.f32.gmra.mxu0 %v1477
  %v1479 = vpop.f32.mrf.mxu0
  %v1480 = vadd.f32 %v1353, %v1479
  %v1481 = vpop.f32.mrf.mxu0
  %1482 = vmatprep.mubr.f32.mxu0 0.0
  %v1483 = vand.u32 %v978, 4294901760
  %v1484 = vsub.f32 %v978, %v1483
  %v1485 = vand.u32 %v1484, 4294901760
  %1486 = vmatmul.mubr.f32.gmra.mxu0 %v1485
  %v1487 = vpop.f32.mrf.mxu0
  %v1488 = vadd.f32 %v1360, %v1487
  %v1489 = vpop.f32.mrf.mxu0
  %1490 = vmatprep.mubr.f32.mxu0 0.0
  %v1491 = vand.u32 %v981, 4294901760
  %v1492 = vsub.f32 %v981, %v1491
  %v1493 = vand.u32 %v1492, 4294901760
  %1494 = vmatmul.mubr.f32.gmra.mxu0 %v1493
  %v1495 = vpop.f32.mrf.mxu0
  %v1496 = vadd.f32 %v1367, %v1495
  %v1497 = vpop.f32.mrf.mxu0
  %1498 = vmatprep.mubr.f32.mxu0 0.0
  %v1499 = vand.u32 %v984, 4294901760
  %v1500 = vsub.f32 %v984, %v1499
  %v1501 = vand.u32 %v1500, 4294901760
  %1502 = vmatmul.mubr.f32.gmra.mxu0 %v1501
  %v1503 = vpop.f32.mrf.mxu0
  %v1504 = vadd.f32 %v1374, %v1503
  %v1505 = vpop.f32.mrf.mxu0
  %1506 = vmatprep.mubr.f32.mxu0 0.0
  %v1507 = vand.u32 %v987, 4294901760
  %v1508 = vsub.f32 %v987, %v1507
  %v1509 = vand.u32 %v1508, 4294901760
  %1510 = vmatmul.mubr.f32.gmra.mxu0 %v1509
  %v1511 = vpop.f32.mrf.mxu0
  %v1512 = vadd.f32 %v1381, %v1511
  %v1513 = vpop.f32.mrf.mxu0
  %1514 = vdwg.mxu0
  %1515 = vmatprep.subr.mxu0 0.0
  %1516 = vmatpush1.msra.mxu0 0.0
  %1517 = vmatprep.subr.mxu0 0.0
  %1518 = vmatpush1.msra.mxu0 0.0
  %1519 = vmatprep.subr.mxu0 0.0
  %1520 = vmatpush1.msra.mxu0 0.0
  %1521 = vmatprep.subr.mxu0 0.0
  %1522 = vmatpush1.msra.mxu0 0.0
  %1523 = vmatprep.subr.mxu0 0.0
  %1524 = vmatpush1.msra.mxu0 0.0
  %1525 = vmatprep.subr.mxu0 0.0
  %1526 = vmatpush1.msra.mxu0 0.0
  %1527 = vmatprep.subr.mxu0 0.0
  %1528 = vmatpush1.msra.mxu0 0.0
  %1529 = vmatprep.subr.mxu0 0.0
  %1530 = vmatpush1.msra.mxu0 0.0
  %1531 = vmatprep.subr.mxu0 0.0
  %1532 = vmatpush1.msra.mxu0 0.0
  %1533 = vmatprep.subr.mxu0 0.0
  %1534 = vmatpush1.msra.mxu0 0.0
  %1535 = vmatprep.subr.mxu0 0.0
  %1536 = vmatpush1.msra.mxu0 0.0
  %1537 = vmatprep.subr.mxu0 0.0
  %1538 = vmatpush1.msra.mxu0 0.0
  %1539 = vmatprep.subr.mxu0 0.0
  %1540 = vmatpush1.msra.mxu0 0.0
  %1541 = vmatprep.subr.mxu0 0.0
  %1542 = vmatpush1.msra.mxu0 0.0
  %1543 = vmatprep.subr.mxu0 0.0
  %v1544 = vand.u32 %v957, 4294901760
  %v1545 = vsub.f32 %v957, %v1544
  %v1546 = vand.u32 %v1545, 4294901760
  %1547 = vmatpush1.msra.mxu0 %v1546
  %1548 = vmatprep.subr.mxu0 0.0
  %v1549 = vand.u32 %v956, 4294901760
  %v1550 = vsub.f32 %v956, %v1549
  %v1551 = vand.u32 %v1550, 4294901760
  %1552 = vmatpush1.msra.mxu0 %v1551
  %1553 = vmatprep.subr.mxu0 0.0
  %1554 = vmatpush2.msra.mxu0 0.0
  %1555 = vmatprep.subr.mxu0 0.0
  %1556 = vmatpush2.msra.mxu0 0.0
  %1557 = vmatprep.subr.mxu0 0.0
  %1558 = vmatpush2.msra.mxu0 0.0
  %1559 = vmatprep.subr.mxu0 0.0
  %1560 = vmatpush2.msra.mxu0 0.0
  %1561 = vmatprep.subr.mxu0 0.0
  %1562 = vmatpush2.msra.mxu0 0.0
  %1563 = vmatprep.subr.mxu0 0.0
  %1564 = vmatpush2.msra.mxu0 0.0
  %1565 = vmatprep.subr.mxu0 0.0
  %1566 = vmatpush2.msra.mxu0 0.0
  %1567 = vmatprep.subr.mxu0 0.0
  %1568 = vmatpush2.msra.mxu0 0.0
  %1569 = vmatprep.subr.mxu0 0.0
  %1570 = vmatpush2.msra.mxu0 0.0
  %1571 = vmatprep.subr.mxu0 0.0
  %1572 = vmatpush2.msra.mxu0 0.0
  %1573 = vmatprep.subr.mxu0 0.0
  %1574 = vmatpush2.msra.mxu0 0.0
  %1575 = vmatprep.subr.mxu0 0.0
  %1576 = vmatpush2.msra.mxu0 0.0
  %1577 = vmatprep.subr.mxu0 0.0
  %1578 = vmatpush2.msra.mxu0 0.0
  %1579 = vmatprep.subr.mxu0 0.0
  %1580 = vmatpush2.msra.mxu0 0.0
  %1581 = vmatprep.subr.mxu0 0.0
  %1582 = vmatpush2.msra.mxu0 0.0
  %1583 = vmatprep.subr.mxu0 0.0
  %1584 = vmatpush2.msra.mxu0 0.0
  %1585 = vmatprep.mubr.f32.mxu0 0.0
  %v1586 = vand.u32 %v966, 4294901760
  %1587 = vmatmul.mubr.f32.gmra.mxu0 %v1586
  %v1588 = vpop.f32.mrf.mxu0
  %v1589 = vadd.f32 %v1456, %v1588
  %v1590 = vpop.f32.mrf.mxu0
  %1591 = vmatprep.mubr.f32.mxu0 0.0
  %v1592 = vand.u32 %v969, 4294901760
  %1593 = vmatmul.mubr.f32.gmra.mxu0 %v1592
  %v1594 = vpop.f32.mrf.mxu0
  %v1595 = vadd.f32 %v1464, %v1594
  %v1596 = vpop.f32.mrf.mxu0
  %1597 = vmatprep.mubr.f32.mxu0 0.0
  %v1598 = vand.u32 %v972, 4294901760
  %1599 = vmatmul.mubr.f32.gmra.mxu0 %v1598
  %v1600 = vpop.f32.mrf.mxu0
  %v1601 = vadd.f32 %v1472, %v1600
  %v1602 = vpop.f32.mrf.mxu0
  %1603 = vmatprep.mubr.f32.mxu0 0.0
  %v1604 = vand.u32 %v975, 4294901760
  %1605 = vmatmul.mubr.f32.gmra.mxu0 %v1604
  %v1606 = vpop.f32.mrf.mxu0
  %v1607 = vadd.f32 %v1480, %v1606
  %v1608 = vpop.f32.mrf.mxu0
  %1609 = vmatprep.mubr.f32.mxu0 0.0
  %v1610 = vand.u32 %v978, 4294901760
  %1611 = vmatmul.mubr.f32.gmra.mxu0 %v1610
  %v1612 = vpop.f32.mrf.mxu0
  %v1613 = vadd.f32 %v1488, %v1612
  %v1614 = vpop.f32.mrf.mxu0
  %1615 = vmatprep.mubr.f32.mxu0 0.0
  %v1616 = vand.u32 %v981, 4294901760
  %1617 = vmatmul.mubr.f32.gmra.mxu0 %v1616
  %v1618 = vpop.f32.mrf.mxu0
  %v1619 = vadd.f32 %v1496, %v1618
  %v1620 = vpop.f32.mrf.mxu0
  %1621 = vmatprep.mubr.f32.mxu0 0.0
  %v1622 = vand.u32 %v984, 4294901760
  %1623 = vmatmul.mubr.f32.gmra.mxu0 %v1622
  %v1624 = vpop.f32.mrf.mxu0
  %v1625 = vadd.f32 %v1504, %v1624
  %v1626 = vpop.f32.mrf.mxu0
  %1627 = vmatprep.mubr.f32.mxu0 0.0
  %v1628 = vand.u32 %v987, 4294901760
  %1629 = vmatmul.mubr.f32.gmra.mxu0 %v1628
  %v1630 = vpop.f32.mrf.mxu0
  %v1631 = vadd.f32 %v1512, %v1630
  %v1632 = vpop.f32.mrf.mxu0
  %1633 = vdwg.mxu0
  %1634 = vmatprep.subr.mxu0 0.0
  %1635 = vmatpush1.msra.mxu0 0.0
  %1636 = vmatprep.subr.mxu0 0.0
  %1637 = vmatpush1.msra.mxu0 0.0
  %1638 = vmatprep.subr.mxu0 0.0
  %1639 = vmatpush1.msra.mxu0 0.0
  %1640 = vmatprep.subr.mxu0 0.0
  %1641 = vmatpush1.msra.mxu0 0.0
  %1642 = vmatprep.subr.mxu0 0.0
  %1643 = vmatpush1.msra.mxu0 0.0
  %1644 = vmatprep.subr.mxu0 0.0
  %1645 = vmatpush1.msra.mxu0 0.0
  %1646 = vmatprep.subr.mxu0 0.0
  %1647 = vmatpush1.msra.mxu0 0.0
  %1648 = vmatprep.subr.mxu0 0.0
  %1649 = vmatpush1.msra.mxu0 0.0
  %1650 = vmatprep.subr.mxu0 0.0
  %1651 = vmatpush1.msra.mxu0 0.0
  %1652 = vmatprep.subr.mxu0 0.0
  %1653 = vmatpush1.msra.mxu0 0.0
  %1654 = vmatprep.subr.mxu0 0.0
  %1655 = vmatpush1.msra.mxu0 0.0
  %1656 = vmatprep.subr.mxu0 0.0
  %1657 = vmatpush1.msra.mxu0 0.0
  %1658 = vmatprep.subr.mxu0 0.0
  %1659 = vmatpush1.msra.mxu0 0.0
  %1660 = vmatprep.subr.mxu0 0.0
  %1661 = vmatpush1.msra.mxu0 0.0
  %1662 = vmatprep.subr.mxu0 0.0
  %v1663 = vand.u32 %v957, 4294901760
  %1664 = vmatpush1.msra.mxu0 %v1663
  %1665 = vmatprep.subr.mxu0 0.0
  %v1666 = vand.u32 %v956, 4294901760
  %1667 = vmatpush1.msra.mxu0 %v1666
  %1668 = vmatprep.subr.mxu0 0.0
  %1669 = vmatpush2.msra.mxu0 0.0
  %1670 = vmatprep.subr.mxu0 0.0
  %1671 = vmatpush2.msra.mxu0 0.0
  %1672 = vmatprep.subr.mxu0 0.0
  %1673 = vmatpush2.msra.mxu0 0.0
  %1674 = vmatprep.subr.mxu0 0.0
  %1675 = vmatpush2.msra.mxu0 0.0
  %1676 = vmatprep.subr.mxu0 0.0
  %1677 = vmatpush2.msra.mxu0 0.0
  %1678 = vmatprep.subr.mxu0 0.0
  %1679 = vmatpush2.msra.mxu0 0.0
  %1680 = vmatprep.subr.mxu0 0.0
  %1681 = vmatpush2.msra.mxu0 0.0
  %1682 = vmatprep.subr.mxu0 0.0
  %1683 = vmatpush2.msra.mxu0 0.0
  %1684 = vmatprep.subr.mxu0 0.0
  %1685 = vmatpush2.msra.mxu0 0.0
  %1686 = vmatprep.subr.mxu0 0.0
  %1687 = vmatpush2.msra.mxu0 0.0
  %1688 = vmatprep.subr.mxu0 0.0
  %1689 = vmatpush2.msra.mxu0 0.0
  %1690 = vmatprep.subr.mxu0 0.0
  %1691 = vmatpush2.msra.mxu0 0.0
  %1692 = vmatprep.subr.mxu0 0.0
  %1693 = vmatpush2.msra.mxu0 0.0
  %1694 = vmatprep.subr.mxu0 0.0
  %1695 = vmatpush2.msra.mxu0 0.0
  %1696 = vmatprep.subr.mxu0 0.0
  %1697 = vmatpush2.msra.mxu0 0.0
  %1698 = vmatprep.subr.mxu0 0.0
  %1699 = vmatpush2.msra.mxu0 0.0
  %1700 = vmatprep.mubr.f32.mxu0 0.0
  %v1701 = vand.u32 %v966, 4294901760
  %1702 = vmatmul.mubr.f32.gmra.mxu0 %v1701
  %v1703 = vpop.f32.mrf.mxu0
  %v1704 = vadd.f32 %v1589, %v1703
  %v1705 = vpop.f32.mrf.mxu0
  %1706 = vmatprep.mubr.f32.mxu0 0.0
  %v1707 = vand.u32 %v969, 4294901760
  %1708 = vmatmul.mubr.f32.gmra.mxu0 %v1707
  %v1709 = vpop.f32.mrf.mxu0
  %v1710 = vadd.f32 %v1595, %v1709
  %v1711 = vpop.f32.mrf.mxu0
  %1712 = vmatprep.mubr.f32.mxu0 0.0
  %v1713 = vand.u32 %v972, 4294901760
  %1714 = vmatmul.mubr.f32.gmra.mxu0 %v1713
  %v1715 = vpop.f32.mrf.mxu0
  %v1716 = vadd.f32 %v1601, %v1715
  %v1717 = vpop.f32.mrf.mxu0
  %1718 = vmatprep.mubr.f32.mxu0 0.0
  %v1719 = vand.u32 %v975, 4294901760
  %1720 = vmatmul.mubr.f32.gmra.mxu0 %v1719
  %v1721 = vpop.f32.mrf.mxu0
  %v1722 = vadd.f32 %v1607, %v1721
  %v1723 = vpop.f32.mrf.mxu0
  %1724 = vmatprep.mubr.f32.mxu0 0.0
  %v1725 = vand.u32 %v978, 4294901760
  %1726 = vmatmul.mubr.f32.gmra.mxu0 %v1725
  %v1727 = vpop.f32.mrf.mxu0
  %v1728 = vadd.f32 %v1613, %v1727
  %v1729 = vpop.f32.mrf.mxu0
  %1730 = vmatprep.mubr.f32.mxu0 0.0
  %v1731 = vand.u32 %v981, 4294901760
  %1732 = vmatmul.mubr.f32.gmra.mxu0 %v1731
  %v1733 = vpop.f32.mrf.mxu0
  %v1734 = vadd.f32 %v1619, %v1733
  %v1735 = vpop.f32.mrf.mxu0
  %1736 = vmatprep.mubr.f32.mxu0 0.0
  %v1737 = vand.u32 %v984, 4294901760
  %1738 = vmatmul.mubr.f32.gmra.mxu0 %v1737
  %v1739 = vpop.f32.mrf.mxu0
  %v1740 = vadd.f32 %v1625, %v1739
  %v1741 = vpop.f32.mrf.mxu0
  %1742 = vmatprep.mubr.f32.mxu0 0.0
  %v1743 = vand.u32 %v987, 4294901760
  %1744 = vmatmul.mubr.f32.gmra.mxu0 %v1743
  %v1745 = vpop.f32.mrf.mxu0
  %v1746 = vadd.f32 %v1631, %v1745
  %v1747 = vpop.f32.mrf.mxu0
  %1748 = vdwg.mxu0
  %1749 = vst.msk [vmem:[%s5] sm:$0xff] %vm39, %v1704
  %1750 = vst.msk [vmem:[%s5 + $0x8] sm:$0xff] %vm39, %v1710
  %1751 = vst.msk [vmem:[%s5 + $0x10] sm:$0xff] %vm39, %v1716
  %1752 = vst.msk [vmem:[%s5 + $0x18] sm:$0xff] %vm39, %v1722
  %1753 = vst.msk [vmem:[%s5 + $0x20] sm:$0xff] %vm39, %v1728
  %1754 = vst.msk [vmem:[%s5 + $0x28] sm:$0xff] %vm39, %v1734
  %1755 = vst.msk [vmem:[%s5 + $0x30] sm:$0xff] %vm39, %v1740
  %1756 = vst.msk [vmem:[%s5 + $0x38] sm:$0xff] %vm39, %v1746
  // Predicated region
  $region22: #{snn_autoencoder_forward.1} parent=0 // pred_check
    _
  $region23: #{snn_autoencoder_forward.1} parent=0 // pred_check_branch
    %1758 = sbr.rel (0) target = $region25
  $region24: #{snn_autoencoder_forward.1} parent=0 // pred_region
    _
  $region25: #{snn_autoencoder_forward.1} parent=0 // pred_fallthru
    _
  // Predicated region
  $region26: #{snn_autoencoder_forward.1} parent=0 // pred_check
    _
  $region27: #{snn_autoencoder_forward.1} parent=0 // pred_check_branch
    %1760 = sbr.rel (0) target = $region29
  $region28: #{snn_autoencoder_forward.1} parent=0 // pred_region
    _
  $region29: #{snn_autoencoder_forward.1} parent=0 // pred_fallthru
    _

</llo_original>
